<compile_context>
chip_gen: v7x
topology: tpu7x:2x2x1
jax: 0.10.0
libtpu: 0.0.40
codegen_flags: <defaults>
</compile_context>

<pallas_src>
import jax
import jax.numpy as jnp
from jax.experimental import pallas as pl
from jax.experimental.pallas import tpu as pltpu

# ----------------------------- configuration (scaled-down XLNet-base) --------
BATCH = 2
SEQ = 8
HIDDEN = 32          # stands in for 768
NUM_HEADS = 2        # stands in for 12
HEAD_DIM = HIDDEN // NUM_HEADS
FF = 64              # stands in for 3072
LAYERS = 2           # stands in for 12
VOCAB = 64
NUM_LABELS = 4       # NOTE: pad to a multiple of 128 if this write ever lands
                     # inside the hot grid loop (lane-dense out_specs).


# ----------------------------- in-kernel helpers -----------------------------
def _layer_norm(x, g, b, eps=1e-12):
    # f32 statistics
    mu = jnp.mean(x, axis=-1, keepdims=True)
    var = jnp.mean((x - mu) ** 2, axis=-1, keepdims=True)
    return (x - mu) * jax.lax.rsqrt(var + eps) * g + b


def _gelu(x):
    # TODO(synk): tanh approximation; HF XLNet / torch GELU default to erf form.
    c = 0.7978845608028654  # sqrt(2/pi)
    return 0.5 * x * (1.0 + jnp.tanh(c * (x + 0.044715 * x * x * x)))


def _softmax(x):
    x = x - jnp.max(x, axis=-1, keepdims=True)
    e = jnp.exp(x)
    # EUP approx reciprocal instead of a VALU divide.
    return e * pl.reciprocal(jnp.sum(e, axis=-1, keepdims=True), approx=True)


# ----------------------------- fused Pallas kernel ---------------------------
def xlnet_fused_kernel(x_ref, bias_ref,
                       wq_ref, wk_ref, wv_ref, wo_ref,
                       ln1g_ref, ln1b_ref, w1_ref, b1_ref, w2_ref, b2_ref,
                       ln2g_ref, ln2b_ref,
                       cls_w_ref, cls_b_ref,
                       logits_ref,
                       h_scratch):
    """All encoder layers (grid axis 0) + mean-pool + classifier, fused.

    The activation is carried across layer steps as a 2-D (B*S, H) bf16
    VMEM scratch; logits are written only on the last layer step.
    """
    layer = pl.program_id(0)

    @pl.when(layer == 0)
    def _():
        h_scratch[...] = x_ref[...]          # load embeddings once (bf16)

    x2 = h_scratch[...]                      # (B*S, H) bf16
    bias = bias_ref[...]                     # (B*NH, 1, S) f32 additive mask

    wq = wq_ref[0]                           # (H, H) bf16
    wk = wk_ref[0]
    wv = wv_ref[0]
    wo = wo_ref[0]

    scale = 1.0 / (HEAD_DIM ** 0.5)

    # --- fused QKV projections on (B*S, H) rows; scale folded into q once.
    q = jnp.dot(x2, wq, preferred_element_type=jnp.float32) * scale
    k = jnp.dot(x2, wk, preferred_element_type=jnp.float32)
    v = jnp.dot(x2, wv, preferred_element_type=jnp.float32)

    def to_heads(t):
        # (B*S, H) -> (NH*B, S, HD) head-major: lane slices + leading-dim
        # reshape/concat only (no lane-splitting reshape of the full tensor).
        parts = [t[:, h * HEAD_DIM:(h + 1) * HEAD_DIM]
                 .reshape(BATCH, SEQ, HEAD_DIM) for h in range(NUM_HEADS)]
        return parts[0] if NUM_HEADS == 1 else jnp.concatenate(parts, axis=0)

    qh = to_heads(q).astype(jnp.bfloat16)
    kh = to_heads(k).astype(jnp.bfloat16)
    vh = to_heads(v).astype(jnp.bfloat16)

    # --- one batched pair of attention einsums over all heads (f32 acc)
    sc = jnp.einsum('bqd,bkd->bqk', qh, kh,
                    preferred_element_type=jnp.float32)          # (NH*B, S, S)
    sc = sc + bias                                               # broadcast over q
    p = _softmax(sc).astype(jnp.bfloat16)
    ctx = jnp.einsum('bqk,bkd->bqd', p, vh,
                     preferred_element_type=jnp.float32)         # (NH*B, S, HD)

    # --- lane-concat heads back to (B*S, H), then ONE full-K W_o matmul
    ctx_rows = jnp.concatenate(
        [ctx[h * BATCH:(h + 1) * BATCH].reshape(BATCH * SEQ, HEAD_DIM)
         for h in range(NUM_HEADS)], axis=-1).astype(jnp.bfloat16)
    attn_out = jnp.dot(ctx_rows, wo, preferred_element_type=jnp.float32)

    h1 = _layer_norm(x2.astype(jnp.float32) + attn_out, ln1g_ref[0], ln1b_ref[0])

    # --- FFN (post-LN), still on (B*S, *) rows; bf16 operands, f32 acc
    ff = jnp.dot(h1.astype(jnp.bfloat16), w1_ref[0],
                 preferred_element_type=jnp.float32) + b1_ref[0]
    ff = _gelu(ff)
    ff = jnp.dot(ff.astype(jnp.bfloat16), w2_ref[0],
                 preferred_element_type=jnp.float32) + b2_ref[0]
    out = _layer_norm(h1 + ff, ln2g_ref[0], ln2b_ref[0])          # f32

    h_scratch[...] = out.astype(jnp.bfloat16)

    # --- tail: mean-pool over seq (torch.mean(last_hidden_state, 1)) + Linear
    @pl.when(layer == pl.num_programs(0) - 1)
    def _():
        pooled = jnp.mean(out.reshape(BATCH, SEQ, HIDDEN), axis=1)   # (B, H) f32
        logits_ref[...] = (
            jnp.dot(pooled, cls_w_ref[...], preferred_element_type=jnp.float32)
            + cls_b_ref[...])


# ----------------------------- pallas_call wrapper ---------------------------
def xlnet_encode_and_classify(x2d, bias, p):
    BS, H = x2d.shape
    B = BATCH
    S = SEQ
    F = p["w1"].shape[-1]
    L = p["cls_w"].shape[-1]

    def rep(shape):
        n = len(shape)
        return pl.BlockSpec(shape, lambda l, n=n: (0,) * n)

    def per_layer(shape):
        n = len(shape)
        return pl.BlockSpec((1,) + shape, lambda l, n=n: (l,) + (0,) * n)

    in_specs = [
        rep((BS, H)),                                          # embeddings (bf16)
        rep((B * NUM_HEADS, 1, S)),                            # attention bias
        per_layer((H, H)), per_layer((H, H)),                  # wq wk
        per_layer((H, H)), per_layer((H, H)),                  # wv wo
        per_layer((1, H)), per_layer((1, H)),                  # ln1 g/b
        per_layer((H, F)), per_layer((1, F)),                  # w1 b1
        per_layer((F, H)), per_layer((1, H)),                  # w2 b2
        per_layer((1, H)), per_layer((1, H)),                  # ln2 g/b
        rep((H, L)), rep((1, L)),                              # classifier w/b
    ]
    return pl.pallas_call(
        xlnet_fused_kernel,
        out_shape=jax.ShapeDtypeStruct((B, L), jnp.float32),
        grid=(LAYERS,),
        in_specs=in_specs,
        out_specs=pl.BlockSpec((B, L), lambda l: (0, 0)),
        scratch_shapes=[pltpu.VMEM((BS, H), jnp.bfloat16)],    # layer-carried act
        compiler_params=pltpu.CompilerParams(
            dimension_semantics=("arbitrary",),     # layers are sequential
            # 48 MB: safe on v7x (64 MiB) and v5e/v6e (128 MiB); at base scale
            # re-budget with batch tiling (see TODO at top of file).
            vmem_limit_bytes=48 * 1024 * 1024),
    )(x2d, bias, p["wq"], p["wk"], p["wv"], p["wo"],
      p["ln1_g"], p["ln1_b"], p["w1"], p["b1"], p["w2"], p["b2"],
      p["ln2_g"], p["ln2_b"], p["cls_w"], p["cls_b"])


# ----------------------------- parameters (stacked per-layer) ----------------
def init_params(key):
    keys = jax.random.split(key, LAYERS + 2)
    params = {"embed": 0.02 * jax.random.normal(keys[0], (VOCAB, HIDDEN), jnp.float32)}

    def stack_bf16(fn):
        return jnp.stack([fn(l) for l in range(LAYERS)], axis=0).astype(jnp.bfloat16)

    layer_keys = [jax.random.split(keys[1 + l], 8) for l in range(LAYERS)]
    params.update({
        # big streamed weights: bf16 (f32 accumulation in-kernel)
        "wq": stack_bf16(lambda l: 0.02 * jax.random.normal(layer_keys[l][0], (HIDDEN, HIDDEN), jnp.float32)),
        "wk": stack_bf16(lambda l: 0.02 * jax.random.normal(layer_keys[l][1], (HIDDEN, HIDDEN), jnp.float32)),
        "wv": stack_bf16(lambda l: 0.02 * jax.random.normal(layer_keys[l][2], (HIDDEN, HIDDEN), jnp.float32)),
        "wo": stack_bf16(lambda l: 0.02 * jax.random.normal(layer_keys[l][3], (HIDDEN, HIDDEN), jnp.float32)),
        "w1": stack_bf16(lambda l: 0.02 * jax.random.normal(layer_keys[l][4], (HIDDEN, FF), jnp.float32)),
        "w2": stack_bf16(lambda l: 0.02 * jax.random.normal(layer_keys[l][5], (FF, HIDDEN), jnp.float32)),
        # small per-layer vectors stay f32
        "ln1_g": jnp.ones((LAYERS, 1, HIDDEN), jnp.float32),
        "ln1_b": jnp.zeros((LAYERS, 1, HIDDEN), jnp.float32),
        "b1": jnp.zeros((LAYERS, 1, FF), jnp.float32),
        "b2": jnp.zeros((LAYERS, 1, HIDDEN), jnp.float32),
        "ln2_g": jnp.ones((LAYERS, 1, HIDDEN), jnp.float32),
        "ln2_b": jnp.zeros((LAYERS, 1, HIDDEN), jnp.float32),
    })

    # classifier: torch.nn.Linear(768, num_labels) with xavier_normal_ weights
    xavier_std = (2.0 / (HIDDEN + NUM_LABELS)) ** 0.5
    params["cls_w"] = xavier_std * jax.random.normal(
        keys[-1], (HIDDEN, NUM_LABELS), jnp.float32)
    params["cls_b"] = jnp.zeros((1, NUM_LABELS), jnp.float32)
    return params


# ----------------------------- forward ---------------------------------------
@jax.jit
def forward(params, input_ids, attention_mask):
    B, S = input_ids.shape
    # embedding lookup (glue), fold batch into rows once, cast to bf16
    h = jnp.take(params["embed"], input_ids, axis=0)                  # (B, S, H)
    x2d = h.reshape(B * S, HIDDEN).astype(jnp.bfloat16)               # (B*S, H)
    # attention mask -> additive bias (0 / -1e9), broadcast over query positions
    # and pre-broadcast over heads on the host (head-major to match the kernel).
    bias = ((attention_mask.astype(jnp.float32) - 1.0) * 1e9).reshape(B, 1, S)
    bias = jnp.tile(bias, (NUM_HEADS, 1, 1))                          # (B*NH, 1, S)
    # single fused pallas_call: all layers + mean-pool + classifier
    return xlnet_encode_and_classify(x2d, bias, params)               # (B, L)


# ----------------------------- main ------------------------------------------
if __name__ == "__main__":
    key = jax.random.PRNGKey(0)
    k_params, k_ids = jax.random.split(key)

    params = init_params(k_params)
    input_ids = jax.random.randint(k_ids, (BATCH, SEQ), 0, VOCAB, dtype=jnp.int32)
    attention_mask = jnp.ones((BATCH, SEQ), jnp.float32).at[1, SEQ - 2:].set(0.0)

    logits = forward(params, input_ids, attention_mask)
    jax.block_until_ready(logits)
    assert logits.shape == (BATCH, NUM_LABELS)
    assert bool(jnp.all(jnp.isfinite(logits)))
    print("KERNEL_OK")
</pallas_src>

<mosaic_0001>
module attributes {stable_mosaic.version = 11 : i64} {
  func.func @xlnet_fused_kernel(%arg0: i32, %arg1: memref<16x32xbf16, #tpu.memory_space<vmem>>, %arg2: memref<4x1x8xf32, #tpu.memory_space<vmem>>, %arg3: memref<1x32x32xbf16, #tpu.memory_space<vmem>>, %arg4: memref<1x32x32xbf16, #tpu.memory_space<vmem>>, %arg5: memref<1x32x32xbf16, #tpu.memory_space<vmem>>, %arg6: memref<1x32x32xbf16, #tpu.memory_space<vmem>>, %arg7: memref<1x1x32xf32, #tpu.memory_space<vmem>>, %arg8: memref<1x1x32xf32, #tpu.memory_space<vmem>>, %arg9: memref<1x32x64xbf16, #tpu.memory_space<vmem>>, %arg10: memref<1x1x64xf32, #tpu.memory_space<vmem>>, %arg11: memref<1x64x32xbf16, #tpu.memory_space<vmem>>, %arg12: memref<1x1x32xf32, #tpu.memory_space<vmem>>, %arg13: memref<1x1x32xf32, #tpu.memory_space<vmem>>, %arg14: memref<1x1x32xf32, #tpu.memory_space<vmem>>, %arg15: memref<32x4xf32, #tpu.memory_space<vmem>>, %arg16: memref<1x4xf32, #tpu.memory_space<vmem>>, %arg17: memref<2x4xf32, #tpu.memory_space<vmem>>, %arg18: memref<16x32xbf16, #tpu.memory_space<vmem>>) attributes {dimension_semantics = [#tpu.dimension_semantics<arbitrary>], iteration_bounds = array<i64: 2>, scalar_prefetch = 0 : i64, scratch_operands = 1 : i64, tpu.core_type = #tpu.core_type<tc>, window_params = [{pipeline_mode = #tpu.pipeline_mode<synchronous>, transform_indices = @transform_0, window_bounds = array<i64: 16, 32>}, {pipeline_mode = #tpu.pipeline_mode<synchronous>, transform_indices = @transform_1, window_bounds = array<i64: 4, 1, 8>}, {transform_indices = @transform_2, window_bounds = array<i64: 1, 32, 32>}, {transform_indices = @transform_3, window_bounds = array<i64: 1, 32, 32>}, {transform_indices = @transform_4, window_bounds = array<i64: 1, 32, 32>}, {transform_indices = @transform_5, window_bounds = array<i64: 1, 32, 32>}, {transform_indices = @transform_6, window_bounds = array<i64: 1, 1, 32>}, {transform_indices = @transform_7, window_bounds = array<i64: 1, 1, 32>}, {transform_indices = @transform_8, window_bounds = array<i64: 1, 32, 64>}, {transform_indices = @transform_9, window_bounds = array<i64: 1, 1, 64>}, {transform_indices = @transform_10, window_bounds = array<i64: 1, 64, 32>}, {transform_indices = @transform_11, window_bounds = array<i64: 1, 1, 32>}, {transform_indices = @transform_12, window_bounds = array<i64: 1, 1, 32>}, {transform_indices = @transform_13, window_bounds = array<i64: 1, 1, 32>}, {pipeline_mode = #tpu.pipeline_mode<synchronous>, transform_indices = @transform_14, window_bounds = array<i64: 32, 4>}, {pipeline_mode = #tpu.pipeline_mode<synchronous>, transform_indices = @transform_15, window_bounds = array<i64: 1, 4>}, {pipeline_mode = #tpu.pipeline_mode<synchronous>, transform_indices = @transform_16, window_bounds = array<i64: 2, 4>}]} {
    %c0_i32 = arith.constant 0 : i32
    %0 = arith.cmpi eq, %arg0, %c0_i32 : i32
    %1 = arith.extui %0 : i1 to i32
    %c0_i32_0 = arith.constant 0 : i32
    %2 = arith.cmpi ne, %1, %c0_i32_0 : i32
    scf.if %2 {
      %c0_68 = arith.constant 0 : index
      %c0_69 = arith.constant 0 : index
      %147 = vector.load %arg1[%c0_68, %c0_69] : memref<16x32xbf16, #tpu.memory_space<vmem>>, vector<16x32xbf16>
      %c0_70 = arith.constant 0 : index
      %c0_71 = arith.constant 0 : index
      %148 = vector.load %arg18[%c0_70, %c0_71] : memref<16x32xbf16, #tpu.memory_space<vmem>>, vector<16x32xbf16>
      tpu.vector_store %arg18[%c0_70, %c0_71], %147 {strides = array<i32>} : memref<16x32xbf16, #tpu.memory_space<vmem>>, vector<16x32xbf16>,
    } else {
    }
    %c0 = arith.constant 0 : index
    %c0_1 = arith.constant 0 : index
    %3 = vector.load %arg18[%c0, %c0_1] : memref<16x32xbf16, #tpu.memory_space<vmem>>, vector<16x32xbf16>
    %c0_2 = arith.constant 0 : index
    %c0_3 = arith.constant 0 : index
    %c0_4 = arith.constant 0 : index
    %4 = vector.load %arg2[%c0_2, %c0_3, %c0_4] : memref<4x1x8xf32, #tpu.memory_space<vmem>>, vector<4x1x8xf32>
    %c0_5 = arith.constant 0 : index
    %c0_6 = arith.constant 0 : index
    %c0_7 = arith.constant 0 : index
    %5 = vector.load %arg3[%c0_5, %c0_6, %c0_7] : memref<1x32x32xbf16, #tpu.memory_space<vmem>>, vector<1x32x32xbf16>
    %6 = vector.shape_cast %5 : vector<1x32x32xbf16> to vector<32x32xbf16>
    %c0_8 = arith.constant 0 : index
    %c0_9 = arith.constant 0 : index
    %c0_10 = arith.constant 0 : index
    %7 = vector.load %arg4[%c0_8, %c0_9, %c0_10] : memref<1x32x32xbf16, #tpu.memory_space<vmem>>, vector<1x32x32xbf16>
    %8 = vector.shape_cast %7 : vector<1x32x32xbf16> to vector<32x32xbf16>
    %c0_11 = arith.constant 0 : index
    %c0_12 = arith.constant 0 : index
    %c0_13 = arith.constant 0 : index
    %9 = vector.load %arg5[%c0_11, %c0_12, %c0_13] : memref<1x32x32xbf16, #tpu.memory_space<vmem>>, vector<1x32x32xbf16>
    %10 = vector.shape_cast %9 : vector<1x32x32xbf16> to vector<32x32xbf16>
    %c0_14 = arith.constant 0 : index
    %c0_15 = arith.constant 0 : index
    %c0_16 = arith.constant 0 : index
    %11 = vector.load %arg6[%c0_14, %c0_15, %c0_16] : memref<1x32x32xbf16, #tpu.memory_space<vmem>>, vector<1x32x32xbf16>
    %12 = vector.shape_cast %11 : vector<1x32x32xbf16> to vector<32x32xbf16>
    %cst = arith.constant dense<0.000000e+00> : vector<16x32xf32>
    %13 = tpu.matmul %3, %6, %cst {dimension_numbers = #tpu.dot_dimension_numbers<[1], [0], [0], [1], [0, 0, 1, 1], [], []>} : vector<16x32xbf16>, vector<32x32xbf16>, vector<16x32xf32> -> vector<16x32xf32>
    %cst_17 = arith.constant 2.500000e-01 : f32
    %14 = vector.broadcast %cst_17 : f32 to vector<16x32xf32>
    %15 = arith.mulf %13, %14 : vector<16x32xf32>
    %cst_18 = arith.constant dense<0.000000e+00> : vector<16x32xf32>
    %16 = tpu.matmul %3, %8, %cst_18 {dimension_numbers = #tpu.dot_dimension_numbers<[1], [0], [0], [1], [0, 0, 1, 1], [], []>} : vector<16x32xbf16>, vector<32x32xbf16>, vector<16x32xf32> -> vector<16x32xf32>
    %cst_19 = arith.constant dense<0.000000e+00> : vector<16x32xf32>
    %17 = tpu.matmul %3, %10, %cst_19 {dimension_numbers = #tpu.dot_dimension_numbers<[1], [0], [0], [1], [0, 0, 1, 1], [], []>} : vector<16x32xbf16>, vector<32x32xbf16>, vector<16x32xf32> -> vector<16x32xf32>
    %18 = vector.extract_strided_slice %15 {offsets = [0, 0], sizes = [16, 16], strides = [1, 1]} : vector<16x32xf32> to vector<16x16xf32>
    %19 = vector.shape_cast %18 : vector<16x16xf32> to vector<2x8x16xf32>
    %20 = vector.extract_strided_slice %15 {offsets = [0, 16], sizes = [16, 16], strides = [1, 1]} : vector<16x32xf32> to vector<16x16xf32>
    %21 = vector.shape_cast %20 : vector<16x16xf32> to vector<2x8x16xf32>
    %22 = tpu.concatenate %19, %21 in 0 : vector<2x8x16xf32>, vector<2x8x16xf32> -> vector<4x8x16xf32>
    %23 = arith.truncf %22 : vector<4x8x16xf32> to vector<4x8x16xbf16>
    %24 = vector.extract_strided_slice %16 {offsets = [0, 0], sizes = [16, 16], strides = [1, 1]} : vector<16x32xf32> to vector<16x16xf32>
    %25 = vector.shape_cast %24 : vector<16x16xf32> to vector<2x8x16xf32>
    %26 = vector.extract_strided_slice %16 {offsets = [0, 16], sizes = [16, 16], strides = [1, 1]} : vector<16x32xf32> to vector<16x16xf32>
    %27 = vector.shape_cast %26 : vector<16x16xf32> to vector<2x8x16xf32>
    %28 = tpu.concatenate %25, %27 in 0 : vector<2x8x16xf32>, vector<2x8x16xf32> -> vector<4x8x16xf32>
    %29 = arith.truncf %28 : vector<4x8x16xf32> to vector<4x8x16xbf16>
    %30 = vector.extract_strided_slice %17 {offsets = [0, 0], sizes = [16, 16], strides = [1, 1]} : vector<16x32xf32> to vector<16x16xf32>
    %31 = vector.shape_cast %30 : vector<16x16xf32> to vector<2x8x16xf32>
    %32 = vector.extract_strided_slice %17 {offsets = [0, 16], sizes = [16, 16], strides = [1, 1]} : vector<16x32xf32> to vector<16x16xf32>
    %33 = vector.shape_cast %32 : vector<16x16xf32> to vector<2x8x16xf32>
    %34 = tpu.concatenate %31, %33 in 0 : vector<2x8x16xf32>, vector<2x8x16xf32> -> vector<4x8x16xf32>
    %35 = arith.truncf %34 : vector<4x8x16xf32> to vector<4x8x16xbf16>
    "tpu.trace_start"() <{level = 10 : i32, message = "bqd,bkd->bqk"}> : () -> ()
    %cst_20 = arith.constant dense<0.000000e+00> : vector<4x8x8xf32>
    %36 = tpu.matmul %23, %29, %cst_20 {dimension_numbers = #tpu.dot_dimension_numbers<[2], [2], [1], [1], [0, 0, 0, 1, 1, 1], [0], [0]>} : vector<4x8x16xbf16>, vector<4x8x16xbf16>, vector<4x8x8xf32> -> vector<4x8x8xf32>
    "tpu.trace_stop"() : () -> ()
    %37 = vector.broadcast %4 : vector<4x1x8xf32> to vector<4x8x8xf32>
    %38 = arith.addf %36, %37 : vector<4x8x8xf32>
    %cst_21 = arith.constant dense<0xFF800000> : vector<4x8xf32>
    %39 = vector.multi_reduction <maximumf>, %38, %cst_21 [2] : vector<4x8x8xf32> to vector<4x8xf32>
    %40 = vector.shape_cast %39 : vector<4x8xf32> to vector<4x8x1xf32>
    %41 = vector.broadcast %40 : vector<4x8x1xf32> to vector<4x8x8xf32>
    %42 = arith.subf %38, %41 : vector<4x8x8xf32>
    %43 = math.exp %42 : vector<4x8x8xf32>
    %cst_22 = arith.constant dense<0.000000e+00> : vector<4x8xf32>
    %44 = vector.multi_reduction <add>, %43, %cst_22 [2] : vector<4x8x8xf32> to vector<4x8xf32>
    %45 = vector.shape_cast %44 : vector<4x8xf32> to vector<4x8x1xf32>
    %46 = tpu.reciprocal %45 {approx = true} : vector<4x8x1xf32> -> vector<4x8x1xf32>
    %47 = vector.broadcast %46 : vector<4x8x1xf32> to vector<4x8x8xf32>
    %48 = arith.mulf %43, %47 : vector<4x8x8xf32>
    %49 = arith.truncf %48 : vector<4x8x8xf32> to vector<4x8x8xbf16>
    "tpu.trace_start"() <{level = 10 : i32, message = "bqk,bkd->bqd"}> : () -> ()
    %cst_23 = arith.constant dense<0.000000e+00> : vector<4x8x16xf32>
    %50 = tpu.matmul %49, %35, %cst_23 {dimension_numbers = #tpu.dot_dimension_numbers<[2], [1], [1], [2], [0, 0, 0, 1, 1, 2], [0], [0]>} : vector<4x8x8xbf16>, vector<4x8x16xbf16>, vector<4x8x16xf32> -> vector<4x8x16xf32>
    "tpu.trace_stop"() : () -> ()
    %51 = vector.extract_strided_slice %50 {offsets = [0, 0, 0], sizes = [2, 8, 16], strides = [1, 1, 1]} : vector<4x8x16xf32> to vector<2x8x16xf32>
    %52 = vector.shape_cast %51 : vector<2x8x16xf32> to vector<16x16xf32>
    %53 = vector.extract_strided_slice %50 {offsets = [2, 0, 0], sizes = [2, 8, 16], strides = [1, 1, 1]} : vector<4x8x16xf32> to vector<2x8x16xf32>
    %54 = vector.shape_cast %53 : vector<2x8x16xf32> to vector<16x16xf32>
    %55 = tpu.concatenate %52, %54 in 1 : vector<16x16xf32>, vector<16x16xf32> -> vector<16x32xf32>
    %56 = arith.truncf %55 : vector<16x32xf32> to vector<16x32xbf16>
    %cst_24 = arith.constant dense<0.000000e+00> : vector<16x32xf32>
    %57 = tpu.matmul %56, %12, %cst_24 {dimension_numbers = #tpu.dot_dimension_numbers<[1], [0], [0], [1], [0, 0, 1, 1], [], []>} : vector<16x32xbf16>, vector<32x32xbf16>, vector<16x32xf32> -> vector<16x32xf32>
    %58 = arith.extf %3 : vector<16x32xbf16> to vector<16x32xf32>
    %59 = arith.addf %58, %57 : vector<16x32xf32>
    %c0_25 = arith.constant 0 : index
    %c0_26 = arith.constant 0 : index
    %c0_27 = arith.constant 0 : index
    %60 = vector.load %arg7[%c0_25, %c0_26, %c0_27] : memref<1x1x32xf32, #tpu.memory_space<vmem>>, vector<1x1x32xf32>
    %61 = vector.shape_cast %60 : vector<1x1x32xf32> to vector<1x32xf32>
    %c0_28 = arith.constant 0 : index
    %c0_29 = arith.constant 0 : index
    %c0_30 = arith.constant 0 : index
    %62 = vector.load %arg8[%c0_28, %c0_29, %c0_30] : memref<1x1x32xf32, #tpu.memory_space<vmem>>, vector<1x1x32xf32>
    %63 = vector.shape_cast %62 : vector<1x1x32xf32> to vector<1x32xf32>
    %cst_31 = arith.constant dense<0.000000e+00> : vector<16xf32>
    %64 = vector.multi_reduction <add>, %59, %cst_31 [1] : vector<16x32xf32> to vector<16xf32>
    %65 = vector.shape_cast %64 : vector<16xf32> to vector<16x1xf32>
    %cst_32 = arith.constant 3.200000e+01 : f32
    %66 = vector.broadcast %cst_32 : f32 to vector<16x1xf32>
    %67 = arith.divf %65, %66 : vector<16x1xf32>
    %68 = vector.broadcast %67 : vector<16x1xf32> to vector<16x32xf32>
    %69 = arith.subf %59, %68 : vector<16x32xf32>
    %70 = arith.mulf %69, %69 : vector<16x32xf32>
    %cst_33 = arith.constant dense<0.000000e+00> : vector<16xf32>
    %71 = vector.multi_reduction <add>, %70, %cst_33 [1] : vector<16x32xf32> to vector<16xf32>
    %72 = vector.shape_cast %71 : vector<16xf32> to vector<16x1xf32>
    %cst_34 = arith.constant 3.200000e+01 : f32
    %73 = vector.broadcast %cst_34 : f32 to vector<16x1xf32>
    %74 = arith.divf %72, %73 : vector<16x1xf32>
    %75 = vector.broadcast %67 : vector<16x1xf32> to vector<16x32xf32>
    %76 = arith.subf %59, %75 : vector<16x32xf32>
    %cst_35 = arith.constant 9.99999996E-13 : f32
    %77 = vector.broadcast %cst_35 : f32 to vector<16x1xf32>
    %78 = arith.addf %74, %77 : vector<16x1xf32>
    %79 = math.rsqrt %78 : vector<16x1xf32>
    %80 = vector.broadcast %79 : vector<16x1xf32> to vector<16x32xf32>
    %81 = arith.mulf %76, %80 : vector<16x32xf32>
    %82 = vector.broadcast %61 : vector<1x32xf32> to vector<16x32xf32>
    %83 = arith.mulf %81, %82 : vector<16x32xf32>
    %84 = vector.broadcast %63 : vector<1x32xf32> to vector<16x32xf32>
    %85 = arith.addf %83, %84 : vector<16x32xf32>
    %86 = arith.truncf %85 : vector<16x32xf32> to vector<16x32xbf16>
    %c0_36 = arith.constant 0 : index
    %c0_37 = arith.constant 0 : index
    %c0_38 = arith.constant 0 : index
    %87 = vector.load %arg9[%c0_36, %c0_37, %c0_38] : memref<1x32x64xbf16, #tpu.memory_space<vmem>>, vector<1x32x64xbf16>
    %88 = vector.shape_cast %87 : vector<1x32x64xbf16> to vector<32x64xbf16>
    %cst_39 = arith.constant dense<0.000000e+00> : vector<16x64xf32>
    %89 = tpu.matmul %86, %88, %cst_39 {dimension_numbers = #tpu.dot_dimension_numbers<[1], [0], [0], [1], [0, 0, 1, 1], [], []>} : vector<16x32xbf16>, vector<32x64xbf16>, vector<16x64xf32> -> vector<16x64xf32>
    %c0_40 = arith.constant 0 : index
    %c0_41 = arith.constant 0 : index
    %c0_42 = arith.constant 0 : index
    %90 = vector.load %arg10[%c0_40, %c0_41, %c0_42] : memref<1x1x64xf32, #tpu.memory_space<vmem>>, vector<1x1x64xf32>
    %91 = vector.shape_cast %90 : vector<1x1x64xf32> to vector<1x64xf32>
    %92 = vector.broadcast %91 : vector<1x64xf32> to vector<16x64xf32>
    %93 = arith.addf %89, %92 : vector<16x64xf32>
    %cst_43 = arith.constant 5.000000e-01 : f32
    %94 = vector.broadcast %cst_43 : f32 to vector<16x64xf32>
    %95 = arith.mulf %94, %93 : vector<16x64xf32>
    %cst_44 = arith.constant 4.471500e-02 : f32
    %96 = vector.broadcast %cst_44 : f32 to vector<16x64xf32>
    %97 = arith.mulf %96, %93 : vector<16x64xf32>
    %98 = arith.mulf %97, %93 : vector<16x64xf32>
    %99 = arith.mulf %98, %93 : vector<16x64xf32>
    %100 = arith.addf %93, %99 : vector<16x64xf32>
    %cst_45 = arith.constant 0.797884583 : f32
    %101 = vector.broadcast %cst_45 : f32 to vector<16x64xf32>
    %102 = arith.mulf %101, %100 : vector<16x64xf32>
    %103 = math.tanh %102 : vector<16x64xf32>
    %cst_46 = arith.constant 1.000000e+00 : f32
    %104 = vector.broadcast %cst_46 : f32 to vector<16x64xf32>
    %105 = arith.addf %104, %103 : vector<16x64xf32>
    %106 = arith.mulf %95, %105 : vector<16x64xf32>
    %107 = arith.truncf %106 : vector<16x64xf32> to vector<16x64xbf16>
    %c0_47 = arith.constant 0 : index
    %c0_48 = arith.constant 0 : index
    %c0_49 = arith.constant 0 : index
    %108 = vector.load %arg11[%c0_47, %c0_48, %c0_49] : memref<1x64x32xbf16, #tpu.memory_space<vmem>>, vector<1x64x32xbf16>
    %109 = vector.shape_cast %108 : vector<1x64x32xbf16> to vector<64x32xbf16>
    %cst_50 = arith.constant dense<0.000000e+00> : vector<16x32xf32>
    %110 = tpu.matmul %107, %109, %cst_50 {dimension_numbers = #tpu.dot_dimension_numbers<[1], [0], [0], [1], [0, 0, 1, 1], [], []>} : vector<16x64xbf16>, vector<64x32xbf16>, vector<16x32xf32> -> vector<16x32xf32>
    %c0_51 = arith.constant 0 : index
    %c0_52 = arith.constant 0 : index
    %c0_53 = arith.constant 0 : index
    %111 = vector.load %arg12[%c0_51, %c0_52, %c0_53] : memref<1x1x32xf32, #tpu.memory_space<vmem>>, vector<1x1x32xf32>
    %112 = vector.shape_cast %111 : vector<1x1x32xf32> to vector<1x32xf32>
    %113 = vector.broadcast %112 : vector<1x32xf32> to vector<16x32xf32>
    %114 = arith.addf %110, %113 : vector<16x32xf32>
    %115 = arith.addf %85, %114 : vector<16x32xf32>
    %c0_54 = arith.constant 0 : index
    %c0_55 = arith.constant 0 : index
    %c0_56 = arith.constant 0 : index
    %116 = vector.load %arg13[%c0_54, %c0_55, %c0_56] : memref<1x1x32xf32, #tpu.memory_space<vmem>>, vector<1x1x32xf32>
    %117 = vector.shape_cast %116 : vector<1x1x32xf32> to vector<1x32xf32>
    %c0_57 = arith.constant 0 : index
    %c0_58 = arith.constant 0 : index
    %c0_59 = arith.constant 0 : index
    %118 = vector.load %arg14[%c0_57, %c0_58, %c0_59] : memref<1x1x32xf32, #tpu.memory_space<vmem>>, vector<1x1x32xf32>
    %119 = vector.shape_cast %118 : vector<1x1x32xf32> to vector<1x32xf32>
    %cst_60 = arith.constant dense<0.000000e+00> : vector<16xf32>
    %120 = vector.multi_reduction <add>, %115, %cst_60 [1] : vector<16x32xf32> to vector<16xf32>
    %121 = vector.shape_cast %120 : vector<16xf32> to vector<16x1xf32>
    %cst_61 = arith.constant 3.200000e+01 : f32
    %122 = vector.broadcast %cst_61 : f32 to vector<16x1xf32>
    %123 = arith.divf %121, %122 : vector<16x1xf32>
    %124 = vector.broadcast %123 : vector<16x1xf32> to vector<16x32xf32>
    %125 = arith.subf %115, %124 : vector<16x32xf32>
    %126 = arith.mulf %125, %125 : vector<16x32xf32>
    %cst_62 = arith.constant dense<0.000000e+00> : vector<16xf32>
    %127 = vector.multi_reduction <add>, %126, %cst_62 [1] : vector<16x32xf32> to vector<16xf32>
    %128 = vector.shape_cast %127 : vector<16xf32> to vector<16x1xf32>
    %cst_63 = arith.constant 3.200000e+01 : f32
    %129 = vector.broadcast %cst_63 : f32 to vector<16x1xf32>
    %130 = arith.divf %128, %129 : vector<16x1xf32>
    %131 = vector.broadcast %123 : vector<16x1xf32> to vector<16x32xf32>
    %132 = arith.subf %115, %131 : vector<16x32xf32>
    %cst_64 = arith.constant 9.99999996E-13 : f32
    %133 = vector.broadcast %cst_64 : f32 to vector<16x1xf32>
    %134 = arith.addf %130, %133 : vector<16x1xf32>
    %135 = math.rsqrt %134 : vector<16x1xf32>
    %136 = vector.broadcast %135 : vector<16x1xf32> to vector<16x32xf32>
    %137 = arith.mulf %132, %136 : vector<16x32xf32>
    %138 = vector.broadcast %117 : vector<1x32xf32> to vector<16x32xf32>
    %139 = arith.mulf %137, %138 : vector<16x32xf32>
    %140 = vector.broadcast %119 : vector<1x32xf32> to vector<16x32xf32>
    %141 = arith.addf %139, %140 : vector<16x32xf32>
    %142 = arith.truncf %141 : vector<16x32xf32> to vector<16x32xbf16>
    %c0_65 = arith.constant 0 : index
    %c0_66 = arith.constant 0 : index
    %143 = vector.load %arg18[%c0_65, %c0_66] : memref<16x32xbf16, #tpu.memory_space<vmem>>, vector<16x32xbf16>
    tpu.vector_store %arg18[%c0_65, %c0_66], %142 {strides = array<i32>} : memref<16x32xbf16, #tpu.memory_space<vmem>>, vector<16x32xbf16>,
    %c1_i32 = arith.constant 1 : i32
    %144 = arith.cmpi eq, %arg0, %c1_i32 : i32
    %145 = arith.extui %144 : i1 to i32
    %c0_i32_67 = arith.constant 0 : i32
    %146 = arith.cmpi ne, %145, %c0_i32_67 : i32
    scf.if %146 {
      %147 = vector.shape_cast %141 : vector<16x32xf32> to vector<2x8x32xf32>
      %cst_68 = arith.constant dense<0.000000e+00> : vector<2x32xf32>
      %148 = vector.multi_reduction <add>, %147, %cst_68 [1] : vector<2x8x32xf32> to vector<2x32xf32>
      %cst_69 = arith.constant 8.000000e+00 : f32
      %149 = vector.broadcast %cst_69 : f32 to vector<2x32xf32>
      %150 = arith.divf %148, %149 : vector<2x32xf32>
      %c0_70 = arith.constant 0 : index
      %c0_71 = arith.constant 0 : index
      %151 = vector.load %arg15[%c0_70, %c0_71] : memref<32x4xf32, #tpu.memory_space<vmem>>, vector<32x4xf32>
      %cst_72 = arith.constant dense<0.000000e+00> : vector<2x4xf32>
      %152 = tpu.matmul %150, %151, %cst_72 {dimension_numbers = #tpu.dot_dimension_numbers<[1], [0], [0], [1], [0, 0, 1, 1], [], []>} : vector<2x32xf32>, vector<32x4xf32>, vector<2x4xf32> -> vector<2x4xf32>
      %c0_73 = arith.constant 0 : index
      %c0_74 = arith.constant 0 : index
      %153 = vector.load %arg16[%c0_73, %c0_74] : memref<1x4xf32, #tpu.memory_space<vmem>>, vector<1x4xf32>
      %154 = vector.broadcast %153 : vector<1x4xf32> to vector<2x4xf32>
      %155 = arith.addf %152, %154 : vector<2x4xf32>
      %c0_75 = arith.constant 0 : index
      %c0_76 = arith.constant 0 : index
      %156 = vector.load %arg17[%c0_75, %c0_76] : memref<2x4xf32, #tpu.memory_space<vmem>>, vector<2x4xf32>
      tpu.vector_store %arg17[%c0_75, %c0_76], %155 {strides = array<i32>} : memref<2x4xf32, #tpu.memory_space<vmem>>, vector<2x4xf32>,
    } else {
    }
    return
  }
  func.func @transform_0(%arg0: i32) -> (i32, i32) {
    %c0_i32 = arith.constant 0 : i32
    %c0_i32_0 = arith.constant 0 : i32
    %c0_i32_1 = arith.constant 0 : i32
    return %c0_i32, %c0_i32_0 : i32, i32
  }
  func.func @transform_1(%arg0: i32) -> (i32, i32, i32) {
    %c0_i32 = arith.constant 0 : i32
    %c0_i32_0 = arith.constant 0 : i32
    %c0_i32_1 = arith.constant 0 : i32
    %c0_i32_2 = arith.constant 0 : i32
    return %c0_i32, %c0_i32_0, %c0_i32_1 : i32, i32, i32
  }
  func.func @transform_2(%arg0: i32) -> (i32, i32, i32) {
    %c0_i32 = arith.constant 0 : i32
    %c0_i32_0 = arith.constant 0 : i32
    %c0_i32_1 = arith.constant 0 : i32
    return %arg0, %c0_i32, %c0_i32_0 : i32, i32, i32
  }
  func.func @transform_3(%arg0: i32) -> (i32, i32, i32) {
    %c0_i32 = arith.constant 0 : i32
    %c0_i32_0 = arith.constant 0 : i32
    %c0_i32_1 = arith.constant 0 : i32
    return %arg0, %c0_i32, %c0_i32_0 : i32, i32, i32
  }
  func.func @transform_4(%arg0: i32) -> (i32, i32, i32) {
    %c0_i32 = arith.constant 0 : i32
    %c0_i32_0 = arith.constant 0 : i32
    %c0_i32_1 = arith.constant 0 : i32
    return %arg0, %c0_i32, %c0_i32_0 : i32, i32, i32
  }
  func.func @transform_5(%arg0: i32) -> (i32, i32, i32) {
    %c0_i32 = arith.constant 0 : i32
    %c0_i32_0 = arith.constant 0 : i32
    %c0_i32_1 = arith.constant 0 : i32
    return %arg0, %c0_i32, %c0_i32_0 : i32, i32, i32
  }
  func.func @transform_6(%arg0: i32) -> (i32, i32, i32) {
    %c0_i32 = arith.constant 0 : i32
    %c0_i32_0 = arith.constant 0 : i32
    %c0_i32_1 = arith.constant 0 : i32
    return %arg0, %c0_i32, %c0_i32_0 : i32, i32, i32
  }
  func.func @transform_7(%arg0: i32) -> (i32, i32, i32) {
    %c0_i32 = arith.constant 0 : i32
    %c0_i32_0 = arith.constant 0 : i32
    %c0_i32_1 = arith.constant 0 : i32
    return %arg0, %c0_i32, %c0_i32_0 : i32, i32, i32
  }
  func.func @transform_8(%arg0: i32) -> (i32, i32, i32) {
    %c0_i32 = arith.constant 0 : i32
    %c0_i32_0 = arith.constant 0 : i32
    %c0_i32_1 = arith.constant 0 : i32
    return %arg0, %c0_i32, %c0_i32_0 : i32, i32, i32
  }
  func.func @transform_9(%arg0: i32) -> (i32, i32, i32) {
    %c0_i32 = arith.constant 0 : i32
    %c0_i32_0 = arith.constant 0 : i32
    %c0_i32_1 = arith.constant 0 : i32
    return %arg0, %c0_i32, %c0_i32_0 : i32, i32, i32
  }
  func.func @transform_10(%arg0: i32) -> (i32, i32, i32) {
    %c0_i32 = arith.constant 0 : i32
    %c0_i32_0 = arith.constant 0 : i32
    %c0_i32_1 = arith.constant 0 : i32
    return %arg0, %c0_i32, %c0_i32_0 : i32, i32, i32
  }
  func.func @transform_11(%arg0: i32) -> (i32, i32, i32) {
    %c0_i32 = arith.constant 0 : i32
    %c0_i32_0 = arith.constant 0 : i32
    %c0_i32_1 = arith.constant 0 : i32
    return %arg0, %c0_i32, %c0_i32_0 : i32, i32, i32
  }
  func.func @transform_12(%arg0: i32) -> (i32, i32, i32) {
    %c0_i32 = arith.constant 0 : i32
    %c0_i32_0 = arith.constant 0 : i32
    %c0_i32_1 = arith.constant 0 : i32
    return %arg0, %c0_i32, %c0_i32_0 : i32, i32, i32
  }
  func.func @transform_13(%arg0: i32) -> (i32, i32, i32) {
    %c0_i32 = arith.constant 0 : i32
    %c0_i32_0 = arith.constant 0 : i32
    %c0_i32_1 = arith.constant 0 : i32
    return %arg0, %c0_i32, %c0_i32_0 : i32, i32, i32
  }
  func.func @transform_14(%arg0: i32) -> (i32, i32) {
    %c0_i32 = arith.constant 0 : i32
    %c0_i32_0 = arith.constant 0 : i32
    %c0_i32_1 = arith.constant 0 : i32
    return %c0_i32, %c0_i32_0 : i32, i32
  }
  func.func @transform_15(%arg0: i32) -> (i32, i32) {
    %c0_i32 = arith.constant 0 : i32
    %c0_i32_0 = arith.constant 0 : i32
    %c0_i32_1 = arith.constant 0 : i32
    return %c0_i32, %c0_i32_0 : i32, i32
  }
  func.func @transform_16(%arg0: i32) -> (i32, i32) {
    %c0_i32 = arith.constant 0 : i32
    %c0_i32_0 = arith.constant 0 : i32
    %c0_i32_1 = arith.constant 0 : i32
    return %c0_i32, %c0_i32_0 : i32, i32
  }
}

</mosaic_0001>

<llo_original>
// kernel: forward.1
$region0: #{forward.1}
  #allocation0 [shape = 'u32[]', space=smem, size = 0x4, offset = 0x4, fixed_abs, tag = 'smem constant byte address 0x4 - core index']
  #allocation1 [shape = 'u32[144,128]{1,0:T(1,128)}', space=vmem, size = 0x12000, scoped, tag = 'internal scratch']
  #allocation2 [shape = 'bf16[16,32]{1,0:T(16,128)(2,1)}', space=vmem, size = 0x1000, scoped, tag = 'scratch operand']
  %s0 = inlined_call_operand.vmem [shape: bf16[16,32], index: 0, kind: input, shape index: {}]
  %s1 = inlined_call_operand.vmem [shape: f32[4,1,8], index: 1, kind: input, shape index: {}]
  %s2 = inlined_call_operand.vmem [shape: bf16[2,32,32], index: 2, kind: input, shape index: {}]
  %s3 = inlined_call_operand.vmem [shape: bf16[2,32,32], index: 3, kind: input, shape index: {}]
  %s4 = inlined_call_operand.vmem [shape: bf16[2,32,32], index: 4, kind: input, shape index: {}]
  %s5 = inlined_call_operand.vmem [shape: bf16[2,32,32], index: 5, kind: input, shape index: {}]
  %s6 = inlined_call_operand.vmem [shape: f32[2,1,32], index: 6, kind: input, shape index: {}]
  %s7 = inlined_call_operand.vmem [shape: f32[2,1,32], index: 7, kind: input, shape index: {}]
  %s8 = inlined_call_operand.vmem [shape: bf16[2,32,64], index: 8, kind: input, shape index: {}]
  %s9 = inlined_call_operand.vmem [shape: f32[2,1,64], index: 9, kind: input, shape index: {}]
  %s10 = inlined_call_operand.vmem [shape: bf16[2,64,32], index: 10, kind: input, shape index: {}]
  %s11 = inlined_call_operand.vmem [shape: f32[2,1,32], index: 11, kind: input, shape index: {}]
  %s12 = inlined_call_operand.vmem [shape: f32[2,1,32], index: 12, kind: input, shape index: {}]
  %s13 = inlined_call_operand.vmem [shape: f32[2,1,32], index: 13, kind: input, shape index: {}]
  %s14 = inlined_call_operand.vmem [shape: f32[32,4], index: 14, kind: input, shape index: {}]
  %s15 = inlined_call_operand.vmem [shape: f32[1,4], index: 15, kind: input, shape index: {}]
  %s16 = inlined_call_operand.hbm [shape: f32[2,4], index: 16, kind: output, shape index: {}]
  %s17 = sld [smem:[#allocation0]]
  $region105: #{forward.1} parent=0
    _
  %s19 = ssub.s32 1, %s17
  %s20 = scalar_select 0, %s19, %s17
  $region1: #{forward.1} parent=0
    #allocation3 [shape = 'u8[1024]{0}', space=vmem, size = 0x400, scoped, tag = 'output window, operand 0, single buffered']
    #allocation4 [shape = 's32[2]{0}', space=sflag, size = 0x8, scoped, tag = 'scoped memory for forward.1']
    %21 = vsyncpa [#allocation4], 0
    loop: start=0, step=1, limit=4
    $region2: #{forward.1} parent=1 // loop_pre_header
      _
    $region3: #{forward.1} parent=1 // loop_header
      %s23 = sphi 0, %s27
      %p24 = scmp.ge.s32.totalorder %s23, 4
      %s31 = sphi 0, %s31
      %s33 = sphi 0, %s31
      %s34 = sphi 0, %s33
      %s48 = sphi 0, %s34
      %s52 = sphi 0, %s52
      %s54 = sphi 0, %s52
      %s55 = sphi 0, %s54
      %s69 = sphi 0, %s55
      %s75 = sphi 0, %s77
      %s78 = sphi 0, %s75
      %s79 = sphi 0, %s78
      %s95 = sphi 0, %s79
      %s101 = sphi 0, %s103
      %s104 = sphi 0, %s101
      %s105 = sphi 0, %s104
      %s121 = sphi 0, %s105
      %s127 = sphi 0, %s129
      %s130 = sphi 0, %s127
      %s131 = sphi 0, %s130
      %s147 = sphi 0, %s131
      %s153 = sphi 0, %s155
      %s156 = sphi 0, %s153
      %s157 = sphi 0, %s156
      %s173 = sphi 0, %s157
      %s179 = sphi 0, %s181
      %s182 = sphi 0, %s179
      %s183 = sphi 0, %s182
      %s199 = sphi 0, %s183
      %s205 = sphi 0, %s207
      %s208 = sphi 0, %s205
      %s209 = sphi 0, %s208
      %s225 = sphi 0, %s209
      %s231 = sphi 0, %s233
      %s234 = sphi 0, %s231
      %s235 = sphi 0, %s234
      %s251 = sphi 0, %s235
      %s257 = sphi 0, %s259
      %s260 = sphi 0, %s257
      %s261 = sphi 0, %s260
      %s277 = sphi 0, %s261
      %s283 = sphi 0, %s285
      %s286 = sphi 0, %s283
      %s287 = sphi 0, %s286
      %s303 = sphi 0, %s287
      %s309 = sphi 0, %s311
      %s312 = sphi 0, %s309
      %s313 = sphi 0, %s312
      %s329 = sphi 0, %s313
      %s335 = sphi 0, %s337
      %s338 = sphi 0, %s335
      %s339 = sphi 0, %s338
      %s355 = sphi 0, %s339
      %s361 = sphi 0, %s363
      %s364 = sphi 0, %s361
      %s365 = sphi 0, %s364
      %s381 = sphi 0, %s365
      %s385 = sphi 0, %s385
      %s387 = sphi 0, %s385
      %s388 = sphi 0, %s387
      %s402 = sphi 0, %s388
      %s406 = sphi 0, %s406
      %s408 = sphi 0, %s406
      %s409 = sphi 0, %s408
      %s423 = sphi 0, %s409
      %s427 = sphi 0, %s427
      %s429 = sphi 0, %s427
      %s430 = sphi 0, %s429
      %s444 = sphi 0, %s430
    $region4: #{forward.1} parent=1 // loop_header_branch
      %26 = sbr.rel (%p24) target = $region8
    $region5: #{forward.1} parent=1 // loop_body
      %s28 = ssub.s32 %s23, 1
      %s29 = ssub.s32 %s23, 2
      %s30 = sadd.s32 %s23, 1
      %s32 = sadd.s32 %s31, 1
      %p35 = scmp.eq.s32.totalorder %s23, 1
      %p36 = scmp.ne.s32.totalorder %s31, %s33
      %p37 = scmp.eq.s32.totalorder %s23, 0
      %p38 = por %p36, %p37
      %p39 = scmp.ne.s32.totalorder %s31, %s33
      %p40 = scmp.eq.s32.totalorder %s28, 1
      %p41 = por %p39, %p40
      %p42 = scmp.ne.s32.totalorder %s33, %s34
      %p43 = scmp.eq.s32.totalorder %s28, 0
      %p44 = por %p42, %p43
      %p45 = scmp.ne.s32.totalorder %s33, %s34
      %p46 = scmp.eq.s32.totalorder %s29, 1
      %p47 = por %p45, %p46
      %p49 = scmp.ne.s32.totalorder %s34, %s48
      %p50 = scmp.eq.s32.totalorder %s29, 0
      %p51 = por %p49, %p50
      %s53 = sadd.s32 %s52, 1
      %p56 = scmp.eq.s32.totalorder %s23, 1
      %p57 = scmp.ne.s32.totalorder %s52, %s54
      %p58 = scmp.eq.s32.totalorder %s23, 0
      %p59 = por %p57, %p58
      %p60 = scmp.ne.s32.totalorder %s52, %s54
      %p61 = scmp.eq.s32.totalorder %s28, 1
      %p62 = por %p60, %p61
      %p63 = scmp.ne.s32.totalorder %s54, %s55
      %p64 = scmp.eq.s32.totalorder %s28, 0
      %p65 = por %p63, %p64
      %p66 = scmp.ne.s32.totalorder %s54, %s55
      %p67 = scmp.eq.s32.totalorder %s29, 1
      %p68 = por %p66, %p67
      %p70 = scmp.ne.s32.totalorder %s55, %s69
      %p71 = scmp.eq.s32.totalorder %s29, 0
      %p72 = por %p70, %p71
      %s73 = ssub.s32 %s23, %s30
      %p74 = scmp.eq.s32.totalorder %s73, 0
      %s76 = sadd.s32 %s75, 1
      %s77 = scalar_select %p74, %s75, %s76
      %p80 = pneg %p74
      %p81 = scmp.eq.s32.totalorder %s23, 1
      %p82 = por %p80, %p81
      %p83 = scmp.ne.s32.totalorder %s75, %s78
      %p84 = scmp.eq.s32.totalorder %s23, 0
      %p85 = por %p83, %p84
      %p86 = scmp.ne.s32.totalorder %s75, %s78
      %p87 = scmp.eq.s32.totalorder %s28, 1
      %p88 = por %p86, %p87
      %p89 = scmp.ne.s32.totalorder %s78, %s79
      %p90 = scmp.eq.s32.totalorder %s28, 0
      %p91 = por %p89, %p90
      %p92 = scmp.ne.s32.totalorder %s78, %s79
      %p93 = scmp.eq.s32.totalorder %s29, 1
      %p94 = por %p92, %p93
      %p96 = scmp.ne.s32.totalorder %s79, %s95
      %p97 = scmp.eq.s32.totalorder %s29, 0
      %p98 = por %p96, %p97
      %s99 = ssub.s32 %s23, %s30
      %p100 = scmp.eq.s32.totalorder %s99, 0
      %s102 = sadd.s32 %s101, 1
      %s103 = scalar_select %p100, %s101, %s102
      %p106 = pneg %p100
      %p107 = scmp.eq.s32.totalorder %s23, 1
      %p108 = por %p106, %p107
      %p109 = scmp.ne.s32.totalorder %s101, %s104
      %p110 = scmp.eq.s32.totalorder %s23, 0
      %p111 = por %p109, %p110
      %p112 = scmp.ne.s32.totalorder %s101, %s104
      %p113 = scmp.eq.s32.totalorder %s28, 1
      %p114 = por %p112, %p113
      %p115 = scmp.ne.s32.totalorder %s104, %s105
      %p116 = scmp.eq.s32.totalorder %s28, 0
      %p117 = por %p115, %p116
      %p118 = scmp.ne.s32.totalorder %s104, %s105
      %p119 = scmp.eq.s32.totalorder %s29, 1
      %p120 = por %p118, %p119
      %p122 = scmp.ne.s32.totalorder %s105, %s121
      %p123 = scmp.eq.s32.totalorder %s29, 0
      %p124 = por %p122, %p123
      %s125 = ssub.s32 %s23, %s30
      %p126 = scmp.eq.s32.totalorder %s125, 0
      %s128 = sadd.s32 %s127, 1
      %s129 = scalar_select %p126, %s127, %s128
      %p132 = pneg %p126
      %p133 = scmp.eq.s32.totalorder %s23, 1
      %p134 = por %p132, %p133
      %p135 = scmp.ne.s32.totalorder %s127, %s130
      %p136 = scmp.eq.s32.totalorder %s23, 0
      %p137 = por %p135, %p136
      %p138 = scmp.ne.s32.totalorder %s127, %s130
      %p139 = scmp.eq.s32.totalorder %s28, 1
      %p140 = por %p138, %p139
      %p141 = scmp.ne.s32.totalorder %s130, %s131
      %p142 = scmp.eq.s32.totalorder %s28, 0
      %p143 = por %p141, %p142
      %p144 = scmp.ne.s32.totalorder %s130, %s131
      %p145 = scmp.eq.s32.totalorder %s29, 1
      %p146 = por %p144, %p145
      %p148 = scmp.ne.s32.totalorder %s131, %s147
      %p149 = scmp.eq.s32.totalorder %s29, 0
      %p150 = por %p148, %p149
      %s151 = ssub.s32 %s23, %s30
      %p152 = scmp.eq.s32.totalorder %s151, 0
      %s154 = sadd.s32 %s153, 1
      %s155 = scalar_select %p152, %s153, %s154
      %p158 = pneg %p152
      %p159 = scmp.eq.s32.totalorder %s23, 1
      %p160 = por %p158, %p159
      %p161 = scmp.ne.s32.totalorder %s153, %s156
      %p162 = scmp.eq.s32.totalorder %s23, 0
      %p163 = por %p161, %p162
      %p164 = scmp.ne.s32.totalorder %s153, %s156
      %p165 = scmp.eq.s32.totalorder %s28, 1
      %p166 = por %p164, %p165
      %p167 = scmp.ne.s32.totalorder %s156, %s157
      %p168 = scmp.eq.s32.totalorder %s28, 0
      %p169 = por %p167, %p168
      %p170 = scmp.ne.s32.totalorder %s156, %s157
      %p171 = scmp.eq.s32.totalorder %s29, 1
      %p172 = por %p170, %p171
      %p174 = scmp.ne.s32.totalorder %s157, %s173
      %p175 = scmp.eq.s32.totalorder %s29, 0
      %p176 = por %p174, %p175
      %s177 = ssub.s32 %s23, %s30
      %p178 = scmp.eq.s32.totalorder %s177, 0
      %s180 = sadd.s32 %s179, 1
      %s181 = scalar_select %p178, %s179, %s180
      %p184 = pneg %p178
      %p185 = scmp.eq.s32.totalorder %s23, 1
      %p186 = por %p184, %p185
      %p187 = scmp.ne.s32.totalorder %s179, %s182
      %p188 = scmp.eq.s32.totalorder %s23, 0
      %p189 = por %p187, %p188
      %p190 = scmp.ne.s32.totalorder %s179, %s182
      %p191 = scmp.eq.s32.totalorder %s28, 1
      %p192 = por %p190, %p191
      %p193 = scmp.ne.s32.totalorder %s182, %s183
      %p194 = scmp.eq.s32.totalorder %s28, 0
      %p195 = por %p193, %p194
      %p196 = scmp.ne.s32.totalorder %s182, %s183
      %p197 = scmp.eq.s32.totalorder %s29, 1
      %p198 = por %p196, %p197
      %p200 = scmp.ne.s32.totalorder %s183, %s199
      %p201 = scmp.eq.s32.totalorder %s29, 0
      %p202 = por %p200, %p201
      %s203 = ssub.s32 %s23, %s30
      %p204 = scmp.eq.s32.totalorder %s203, 0
      %s206 = sadd.s32 %s205, 1
      %s207 = scalar_select %p204, %s205, %s206
      %p210 = pneg %p204
      %p211 = scmp.eq.s32.totalorder %s23, 1
      %p212 = por %p210, %p211
      %p213 = scmp.ne.s32.totalorder %s205, %s208
      %p214 = scmp.eq.s32.totalorder %s23, 0
      %p215 = por %p213, %p214
      %p216 = scmp.ne.s32.totalorder %s205, %s208
      %p217 = scmp.eq.s32.totalorder %s28, 1
      %p218 = por %p216, %p217
      %p219 = scmp.ne.s32.totalorder %s208, %s209
      %p220 = scmp.eq.s32.totalorder %s28, 0
      %p221 = por %p219, %p220
      %p222 = scmp.ne.s32.totalorder %s208, %s209
      %p223 = scmp.eq.s32.totalorder %s29, 1
      %p224 = por %p222, %p223
      %p226 = scmp.ne.s32.totalorder %s209, %s225
      %p227 = scmp.eq.s32.totalorder %s29, 0
      %p228 = por %p226, %p227
      %s229 = ssub.s32 %s23, %s30
      %p230 = scmp.eq.s32.totalorder %s229, 0
      %s232 = sadd.s32 %s231, 1
      %s233 = scalar_select %p230, %s231, %s232
      %p236 = pneg %p230
      %p237 = scmp.eq.s32.totalorder %s23, 1
      %p238 = por %p236, %p237
      %p239 = scmp.ne.s32.totalorder %s231, %s234
      %p240 = scmp.eq.s32.totalorder %s23, 0
      %p241 = por %p239, %p240
      %p242 = scmp.ne.s32.totalorder %s231, %s234
      %p243 = scmp.eq.s32.totalorder %s28, 1
      %p244 = por %p242, %p243
      %p245 = scmp.ne.s32.totalorder %s234, %s235
      %p246 = scmp.eq.s32.totalorder %s28, 0
      %p247 = por %p245, %p246
      %p248 = scmp.ne.s32.totalorder %s234, %s235
      %p249 = scmp.eq.s32.totalorder %s29, 1
      %p250 = por %p248, %p249
      %p252 = scmp.ne.s32.totalorder %s235, %s251
      %p253 = scmp.eq.s32.totalorder %s29, 0
      %p254 = por %p252, %p253
      %s255 = ssub.s32 %s23, %s30
      %p256 = scmp.eq.s32.totalorder %s255, 0
      %s258 = sadd.s32 %s257, 1
      %s259 = scalar_select %p256, %s257, %s258
      %p262 = pneg %p256
      %p263 = scmp.eq.s32.totalorder %s23, 1
      %p264 = por %p262, %p263
      %p265 = scmp.ne.s32.totalorder %s257, %s260
      %p266 = scmp.eq.s32.totalorder %s23, 0
      %p267 = por %p265, %p266
      %p268 = scmp.ne.s32.totalorder %s257, %s260
      %p269 = scmp.eq.s32.totalorder %s28, 1
      %p270 = por %p268, %p269
      %p271 = scmp.ne.s32.totalorder %s260, %s261
      %p272 = scmp.eq.s32.totalorder %s28, 0
      %p273 = por %p271, %p272
      %p274 = scmp.ne.s32.totalorder %s260, %s261
      %p275 = scmp.eq.s32.totalorder %s29, 1
      %p276 = por %p274, %p275
      %p278 = scmp.ne.s32.totalorder %s261, %s277
      %p279 = scmp.eq.s32.totalorder %s29, 0
      %p280 = por %p278, %p279
      %s281 = ssub.s32 %s23, %s30
      %p282 = scmp.eq.s32.totalorder %s281, 0
      %s284 = sadd.s32 %s283, 1
      %s285 = scalar_select %p282, %s283, %s284
      %p288 = pneg %p282
      %p289 = scmp.eq.s32.totalorder %s23, 1
      %p290 = por %p288, %p289
      %p291 = scmp.ne.s32.totalorder %s283, %s286
      %p292 = scmp.eq.s32.totalorder %s23, 0
      %p293 = por %p291, %p292
      %p294 = scmp.ne.s32.totalorder %s283, %s286
      %p295 = scmp.eq.s32.totalorder %s28, 1
      %p296 = por %p294, %p295
      %p297 = scmp.ne.s32.totalorder %s286, %s287
      %p298 = scmp.eq.s32.totalorder %s28, 0
      %p299 = por %p297, %p298
      %p300 = scmp.ne.s32.totalorder %s286, %s287
      %p301 = scmp.eq.s32.totalorder %s29, 1
      %p302 = por %p300, %p301
      %p304 = scmp.ne.s32.totalorder %s287, %s303
      %p305 = scmp.eq.s32.totalorder %s29, 0
      %p306 = por %p304, %p305
      %s307 = ssub.s32 %s23, %s30
      %p308 = scmp.eq.s32.totalorder %s307, 0
      %s310 = sadd.s32 %s309, 1
      %s311 = scalar_select %p308, %s309, %s310
      %p314 = pneg %p308
      %p315 = scmp.eq.s32.totalorder %s23, 1
      %p316 = por %p314, %p315
      %p317 = scmp.ne.s32.totalorder %s309, %s312
      %p318 = scmp.eq.s32.totalorder %s23, 0
      %p319 = por %p317, %p318
      %p320 = scmp.ne.s32.totalorder %s309, %s312
      %p321 = scmp.eq.s32.totalorder %s28, 1
      %p322 = por %p320, %p321
      %p323 = scmp.ne.s32.totalorder %s312, %s313
      %p324 = scmp.eq.s32.totalorder %s28, 0
      %p325 = por %p323, %p324
      %p326 = scmp.ne.s32.totalorder %s312, %s313
      %p327 = scmp.eq.s32.totalorder %s29, 1
      %p328 = por %p326, %p327
      %p330 = scmp.ne.s32.totalorder %s313, %s329
      %p331 = scmp.eq.s32.totalorder %s29, 0
      %p332 = por %p330, %p331
      %s333 = ssub.s32 %s23, %s30
      %p334 = scmp.eq.s32.totalorder %s333, 0
      %s336 = sadd.s32 %s335, 1
      %s337 = scalar_select %p334, %s335, %s336
      %p340 = pneg %p334
      %p341 = scmp.eq.s32.totalorder %s23, 1
      %p342 = por %p340, %p341
      %p343 = scmp.ne.s32.totalorder %s335, %s338
      %p344 = scmp.eq.s32.totalorder %s23, 0
      %p345 = por %p343, %p344
      %p346 = scmp.ne.s32.totalorder %s335, %s338
      %p347 = scmp.eq.s32.totalorder %s28, 1
      %p348 = por %p346, %p347
      %p349 = scmp.ne.s32.totalorder %s338, %s339
      %p350 = scmp.eq.s32.totalorder %s28, 0
      %p351 = por %p349, %p350
      %p352 = scmp.ne.s32.totalorder %s338, %s339
      %p353 = scmp.eq.s32.totalorder %s29, 1
      %p354 = por %p352, %p353
      %p356 = scmp.ne.s32.totalorder %s339, %s355
      %p357 = scmp.eq.s32.totalorder %s29, 0
      %p358 = por %p356, %p357
      %s359 = ssub.s32 %s23, %s30
      %p360 = scmp.eq.s32.totalorder %s359, 0
      %s362 = sadd.s32 %s361, 1
      %s363 = scalar_select %p360, %s361, %s362
      %p366 = pneg %p360
      %p367 = scmp.eq.s32.totalorder %s23, 1
      %p368 = por %p366, %p367
      %p369 = scmp.ne.s32.totalorder %s361, %s364
      %p370 = scmp.eq.s32.totalorder %s23, 0
      %p371 = por %p369, %p370
      %p372 = scmp.ne.s32.totalorder %s361, %s364
      %p373 = scmp.eq.s32.totalorder %s28, 1
      %p374 = por %p372, %p373
      %p375 = scmp.ne.s32.totalorder %s364, %s365
      %p376 = scmp.eq.s32.totalorder %s28, 0
      %p377 = por %p375, %p376
      %p378 = scmp.ne.s32.totalorder %s364, %s365
      %p379 = scmp.eq.s32.totalorder %s29, 1
      %p380 = por %p378, %p379
      %p382 = scmp.ne.s32.totalorder %s365, %s381
      %p383 = scmp.eq.s32.totalorder %s29, 0
      %p384 = por %p382, %p383
      %s386 = sadd.s32 %s385, 1
      %p389 = scmp.eq.s32.totalorder %s23, 1
      %p390 = scmp.ne.s32.totalorder %s385, %s387
      %p391 = scmp.eq.s32.totalorder %s23, 0
      %p392 = por %p390, %p391
      %p393 = scmp.ne.s32.totalorder %s385, %s387
      %p394 = scmp.eq.s32.totalorder %s28, 1
      %p395 = por %p393, %p394
      %p396 = scmp.ne.s32.totalorder %s387, %s388
      %p397 = scmp.eq.s32.totalorder %s28, 0
      %p398 = por %p396, %p397
      %p399 = scmp.ne.s32.totalorder %s387, %s388
      %p400 = scmp.eq.s32.totalorder %s29, 1
      %p401 = por %p399, %p400
      %p403 = scmp.ne.s32.totalorder %s388, %s402
      %p404 = scmp.eq.s32.totalorder %s29, 0
      %p405 = por %p403, %p404
      %s407 = sadd.s32 %s406, 1
      %p410 = scmp.eq.s32.totalorder %s23, 1
      %p411 = scmp.ne.s32.totalorder %s406, %s408
      %p412 = scmp.eq.s32.totalorder %s23, 0
      %p413 = por %p411, %p412
      %p414 = scmp.ne.s32.totalorder %s406, %s408
      %p415 = scmp.eq.s32.totalorder %s28, 1
      %p416 = por %p414, %p415
      %p417 = scmp.ne.s32.totalorder %s408, %s409
      %p418 = scmp.eq.s32.totalorder %s28, 0
      %p419 = por %p417, %p418
      %p420 = scmp.ne.s32.totalorder %s408, %s409
      %p421 = scmp.eq.s32.totalorder %s29, 1
      %p422 = por %p420, %p421
      %p424 = scmp.ne.s32.totalorder %s409, %s423
      %p425 = scmp.eq.s32.totalorder %s29, 0
      %p426 = por %p424, %p425
      %s428 = sadd.s32 %s427, 1
      %p431 = scmp.eq.s32.totalorder %s23, 1
      %p432 = scmp.ne.s32.totalorder %s427, %s429
      %p433 = scmp.eq.s32.totalorder %s23, 0
      %p434 = por %p432, %p433
      %p435 = scmp.ne.s32.totalorder %s427, %s429
      %p436 = scmp.eq.s32.totalorder %s28, 1
      %p437 = por %p435, %p436
      %p438 = scmp.ne.s32.totalorder %s429, %s430
      %p439 = scmp.eq.s32.totalorder %s28, 0
      %p440 = por %p438, %p439
      %p441 = scmp.ne.s32.totalorder %s429, %s430
      %p442 = scmp.eq.s32.totalorder %s29, 1
      %p443 = por %p441, %p442
      %p445 = scmp.ne.s32.totalorder %s430, %s444
      %p446 = scmp.eq.s32.totalorder %s29, 0
      %p447 = por %p445, %p446
      %p448 = scmp.le.s32.totalorder 1, %s23
      %p449 = scmp.lt.s32.totalorder %s23, 3
      %p450 = pnand %p448, %p449
      %p451 = pneg %p450
      // Predicated region
      $region9: #{forward.1} parent=5 // pred_check
        _
      $region10: #{forward.1} parent=5 // pred_check_branch
        %453 = sbr.rel (%p450) target = $region12
      $region11: #{forward.1} parent=5 // pred_region
        %s454 = ssub.s32 %s23, 1
        // Predicated region
        $region13: #{forward.1} parent=11 // pred_check
          %p455 = pneg %p44
        $region14: #{forward.1} parent=11 // pred_check_branch
          %457 = sbr.rel (%p455) target = $region16
        $region15: #{forward.1} parent=11 // pred_region
          _
        $region16: #{forward.1} parent=11 // pred_fallthru
          _
        // Predicated region
        $region17: #{forward.1} parent=11 // pred_check
          %p458 = pneg %p65
        $region18: #{forward.1} parent=11 // pred_check_branch
          %460 = sbr.rel (%p458) target = $region20
        $region19: #{forward.1} parent=11 // pred_region
          _
        $region20: #{forward.1} parent=11 // pred_fallthru
          _
        // Predicated region
        $region21: #{forward.1} parent=11 // pred_check
          %p461 = pneg %p398
        $region22: #{forward.1} parent=11 // pred_check_branch
          %463 = sbr.rel (%p461) target = $region24
        $region23: #{forward.1} parent=11 // pred_region
          _
        $region24: #{forward.1} parent=11 // pred_fallthru
          _
        // Predicated region
        $region25: #{forward.1} parent=11 // pred_check
          %p464 = pneg %p419
        $region26: #{forward.1} parent=11 // pred_check_branch
          %466 = sbr.rel (%p464) target = $region28
        $region27: #{forward.1} parent=11 // pred_region
          _
        $region28: #{forward.1} parent=11 // pred_fallthru
          _
      $region12: #{forward.1} parent=5 // pred_fallthru
        _
      %p467 = scmp.lt.s32.totalorder %s23, 2
      // Predicated region
      $region29: #{forward.1} parent=5 // pred_check
        %p468 = pneg %p467
      $region30: #{forward.1} parent=5 // pred_check_branch
        %470 = sbr.rel (%p468) target = $region32
      $region31: #{forward.1} parent=5 // pred_region
        // Predicated region
        $region33: #{forward.1} parent=31 // pred_check
          %p471 = pneg %p85
        $region34: #{forward.1} parent=31 // pred_check_branch
          %473 = sbr.rel (%p471) target = $region36
        $region35: #{forward.1} parent=31 // pred_region
          %p474 = scmp.lt.s32.totalorder %s23, 1
          %s475 = scalar_select %p474, %s23, 1
          %s476 = smul.addr %s475, 4
          %s477 = smul.addr %s476, 4
          %s478 = scalar_lea.vmem %s2, %s477
        $region36: #{forward.1} parent=31 // pred_fallthru
          _
        // Predicated region
        $region37: #{forward.1} parent=31 // pred_check
          %p479 = pneg %p111
        $region38: #{forward.1} parent=31 // pred_check_branch
          %481 = sbr.rel (%p479) target = $region40
        $region39: #{forward.1} parent=31 // pred_region
          %p482 = scmp.lt.s32.totalorder %s23, 1
          %s483 = scalar_select %p482, %s23, 1
          %s484 = smul.addr %s483, 4
          %s485 = smul.addr %s484, 4
          %s486 = scalar_lea.vmem %s3, %s485
        $region40: #{forward.1} parent=31 // pred_fallthru
          _
        // Predicated region
        $region41: #{forward.1} parent=31 // pred_check
          %p487 = pneg %p137
        $region42: #{forward.1} parent=31 // pred_check_branch
          %489 = sbr.rel (%p487) target = $region44
        $region43: #{forward.1} parent=31 // pred_region
          %p490 = scmp.lt.s32.totalorder %s23, 1
          %s491 = scalar_select %p490, %s23, 1
          %s492 = smul.addr %s491, 4
          %s493 = smul.addr %s492, 4
          %s494 = scalar_lea.vmem %s4, %s493
        $region44: #{forward.1} parent=31 // pred_fallthru
          _
        // Predicated region
        $region45: #{forward.1} parent=31 // pred_check
          %p495 = pneg %p163
        $region46: #{forward.1} parent=31 // pred_check_branch
          %497 = sbr.rel (%p495) target = $region48
        $region47: #{forward.1} parent=31 // pred_region
          %p498 = scmp.lt.s32.totalorder %s23, 1
          %s499 = scalar_select %p498, %s23, 1
          %s500 = smul.addr %s499, 4
          %s501 = smul.addr %s500, 4
          %s502 = scalar_lea.vmem %s5, %s501
        $region48: #{forward.1} parent=31 // pred_fallthru
          _
        // Predicated region
        $region49: #{forward.1} parent=31 // pred_check
          %p503 = pneg %p189
        $region50: #{forward.1} parent=31 // pred_check_branch
          %505 = sbr.rel (%p503) target = $region52
        $region51: #{forward.1} parent=31 // pred_region
          %p506 = scmp.lt.s32.totalorder %s23, 1
          %s507 = scalar_select %p506, %s23, 1
          %s508 = scalar_lea.vmem %s6, %s507
        $region52: #{forward.1} parent=31 // pred_fallthru
          _
        // Predicated region
        $region53: #{forward.1} parent=31 // pred_check
          %p509 = pneg %p215
        $region54: #{forward.1} parent=31 // pred_check_branch
          %511 = sbr.rel (%p509) target = $region56
        $region55: #{forward.1} parent=31 // pred_region
          %p512 = scmp.lt.s32.totalorder %s23, 1
          %s513 = scalar_select %p512, %s23, 1
          %s514 = scalar_lea.vmem %s7, %s513
        $region56: #{forward.1} parent=31 // pred_fallthru
          _
        // Predicated region
        $region57: #{forward.1} parent=31 // pred_check
          %p515 = pneg %p241
        $region58: #{forward.1} parent=31 // pred_check_branch
          %517 = sbr.rel (%p515) target = $region60
        $region59: #{forward.1} parent=31 // pred_region
          %p518 = scmp.lt.s32.totalorder %s23, 1
          %s519 = scalar_select %p518, %s23, 1
          %s520 = smul.addr %s519, 4
          %s521 = smul.addr %s520, 4
          %s522 = scalar_lea.vmem %s8, %s521
        $region60: #{forward.1} parent=31 // pred_fallthru
          _
        // Predicated region
        $region61: #{forward.1} parent=31 // pred_check
          %p523 = pneg %p267
        $region62: #{forward.1} parent=31 // pred_check_branch
          %525 = sbr.rel (%p523) target = $region64
        $region63: #{forward.1} parent=31 // pred_region
          %p526 = scmp.lt.s32.totalorder %s23, 1
          %s527 = scalar_select %p526, %s23, 1
          %s528 = scalar_lea.vmem %s9, %s527
        $region64: #{forward.1} parent=31 // pred_fallthru
          _
        // Predicated region
        $region65: #{forward.1} parent=31 // pred_check
          %p529 = pneg %p293
        $region66: #{forward.1} parent=31 // pred_check_branch
          %531 = sbr.rel (%p529) target = $region68
        $region67: #{forward.1} parent=31 // pred_region
          %p532 = scmp.lt.s32.totalorder %s23, 1
          %s533 = scalar_select %p532, %s23, 1
          %s534 = smul.addr %s533, 8
          %s535 = smul.addr %s534, 4
          %s536 = scalar_lea.vmem %s10, %s535
        $region68: #{forward.1} parent=31 // pred_fallthru
          _
        // Predicated region
        $region69: #{forward.1} parent=31 // pred_check
          %p537 = pneg %p319
        $region70: #{forward.1} parent=31 // pred_check_branch
          %539 = sbr.rel (%p537) target = $region72
        $region71: #{forward.1} parent=31 // pred_region
          %p540 = scmp.lt.s32.totalorder %s23, 1
          %s541 = scalar_select %p540, %s23, 1
          %s542 = scalar_lea.vmem %s11, %s541
        $region72: #{forward.1} parent=31 // pred_fallthru
          _
        // Predicated region
        $region73: #{forward.1} parent=31 // pred_check
          %p543 = pneg %p345
        $region74: #{forward.1} parent=31 // pred_check_branch
          %545 = sbr.rel (%p543) target = $region76
        $region75: #{forward.1} parent=31 // pred_region
          %p546 = scmp.lt.s32.totalorder %s23, 1
          %s547 = scalar_select %p546, %s23, 1
          %s548 = scalar_lea.vmem %s12, %s547
        $region76: #{forward.1} parent=31 // pred_fallthru
          _
        // Predicated region
        $region77: #{forward.1} parent=31 // pred_check
          %p549 = pneg %p371
        $region78: #{forward.1} parent=31 // pred_check_branch
          %551 = sbr.rel (%p549) target = $region80
        $region79: #{forward.1} parent=31 // pred_region
          %p552 = scmp.lt.s32.totalorder %s23, 1
          %s553 = scalar_select %p552, %s23, 1
          %s554 = scalar_lea.vmem %s13, %s553
        $region80: #{forward.1} parent=31 // pred_fallthru
          _
      $region32: #{forward.1} parent=5 // pred_fallthru
        _
      %p555 = scmp.le.s32.totalorder 1, %s23
      %p556 = scmp.lt.s32.totalorder %s23, 3
      %p557 = pnand %p555, %p556
      %p558 = pneg %p557
      // Predicated region
      $region81: #{forward.1} parent=5 // pred_check
        _
      $region82: #{forward.1} parent=5 // pred_check_branch
        %560 = sbr.rel (%p557) target = $region84
      $region83: #{forward.1} parent=5 // pred_region
        %s561 = ssub.s32 %s23, 1
        %p562 = pneg %p44
        %p563 = pneg %p41
        %p564 = pneg %p65
        %p565 = pneg %p62
        %p566 = scmp.lt.s32.totalorder %s28, 1
        %s567 = scalar_select %p566, %s28, 1
        %s568 = smul.addr %s567, 4
        %s569 = smul.addr %s568, 4
        %s570 = scalar_lea.vmem %s2, %s569
        %p571 = pneg %p91
        %p572 = pneg %p88
        %p573 = scmp.lt.s32.totalorder %s28, 1
        %s574 = scalar_select %p573, %s28, 1
        %s575 = smul.addr %s574, 4
        %s576 = smul.addr %s575, 4
        %s577 = scalar_lea.vmem %s3, %s576
        %p578 = pneg %p117
        %p579 = pneg %p114
        %p580 = scmp.lt.s32.totalorder %s28, 1
        %s581 = scalar_select %p580, %s28, 1
        %s582 = smul.addr %s581, 4
        %s583 = smul.addr %s582, 4
        %s584 = scalar_lea.vmem %s4, %s583
        %p585 = pneg %p143
        %p586 = pneg %p140
        %p587 = scmp.lt.s32.totalorder %s28, 1
        %s588 = scalar_select %p587, %s28, 1
        %s589 = smul.addr %s588, 4
        %s590 = smul.addr %s589, 4
        %s591 = scalar_lea.vmem %s5, %s590
        %p592 = pneg %p169
        %p593 = pneg %p166
        %p594 = scmp.lt.s32.totalorder %s28, 1
        %s595 = scalar_select %p594, %s28, 1
        %s596 = scalar_lea.vmem %s6, %s595
        %p597 = pneg %p195
        %p598 = pneg %p192
        %p599 = scmp.lt.s32.totalorder %s28, 1
        %s600 = scalar_select %p599, %s28, 1
        %s601 = scalar_lea.vmem %s7, %s600
        %p602 = pneg %p221
        %p603 = pneg %p218
        %p604 = scmp.lt.s32.totalorder %s28, 1
        %s605 = scalar_select %p604, %s28, 1
        %s606 = smul.addr %s605, 4
        %s607 = smul.addr %s606, 4
        %s608 = scalar_lea.vmem %s8, %s607
        %p609 = pneg %p247
        %p610 = pneg %p244
        %p611 = scmp.lt.s32.totalorder %s28, 1
        %s612 = scalar_select %p611, %s28, 1
        %s613 = scalar_lea.vmem %s9, %s612
        %p614 = pneg %p273
        %p615 = pneg %p270
        %p616 = scmp.lt.s32.totalorder %s28, 1
        %s617 = scalar_select %p616, %s28, 1
        %s618 = smul.addr %s617, 8
        %s619 = smul.addr %s618, 4
        %s620 = scalar_lea.vmem %s10, %s619
        %p621 = pneg %p299
        %p622 = pneg %p296
        %p623 = scmp.lt.s32.totalorder %s28, 1
        %s624 = scalar_select %p623, %s28, 1
        %s625 = scalar_lea.vmem %s11, %s624
        %p626 = pneg %p325
        %p627 = pneg %p322
        %p628 = scmp.lt.s32.totalorder %s28, 1
        %s629 = scalar_select %p628, %s28, 1
        %s630 = scalar_lea.vmem %s12, %s629
        %p631 = pneg %p351
        %p632 = pneg %p348
        %p633 = scmp.lt.s32.totalorder %s28, 1
        %s634 = scalar_select %p633, %s28, 1
        %s635 = scalar_lea.vmem %s13, %s634
        %p636 = pneg %p377
        %p637 = pneg %p374
        %p638 = pneg %p398
        %p639 = pneg %p395
        %p640 = pneg %p419
        %p641 = pneg %p416
        %p642 = pneg %p440
        %p643 = pneg %p437
        %p644 = scmp.lt.s32.totalorder %s28, 1
        %s645 = scalar_select %p644, %s28, 1
        %s646 = smul.addr %s645, 4
        %s647 = smul.addr %s646, 4
        %s648 = scalar_lea.vmem %s2, %s647
        %p649 = scmp.lt.s32.totalorder %s28, 1
        %s650 = scalar_select %p649, %s28, 1
        %s651 = smul.addr %s650, 4
        %s652 = smul.addr %s651, 4
        %s653 = scalar_lea.vmem %s3, %s652
        %p654 = scmp.lt.s32.totalorder %s28, 1
        %s655 = scalar_select %p654, %s28, 1
        %s656 = smul.addr %s655, 4
        %s657 = smul.addr %s656, 4
        %s658 = scalar_lea.vmem %s4, %s657
        %p659 = scmp.lt.s32.totalorder %s28, 1
        %s660 = scalar_select %p659, %s28, 1
        %s661 = smul.addr %s660, 4
        %s662 = smul.addr %s661, 4
        %s663 = scalar_lea.vmem %s5, %s662
        %p664 = scmp.lt.s32.totalorder %s28, 1
        %s665 = scalar_select %p664, %s28, 1
        %s666 = scalar_lea.vmem %s6, %s665
        %p667 = scmp.lt.s32.totalorder %s28, 1
        %s668 = scalar_select %p667, %s28, 1
        %s669 = scalar_lea.vmem %s7, %s668
        %p670 = scmp.lt.s32.totalorder %s28, 1
        %s671 = scalar_select %p670, %s28, 1
        %s672 = smul.addr %s671, 4
        %s673 = smul.addr %s672, 4
        %s674 = scalar_lea.vmem %s8, %s673
        %p675 = scmp.lt.s32.totalorder %s28, 1
        %s676 = scalar_select %p675, %s28, 1
        %s677 = scalar_lea.vmem %s9, %s676
        %p678 = scmp.lt.s32.totalorder %s28, 1
        %s679 = scalar_select %p678, %s28, 1
        %s680 = smul.addr %s679, 8
        %s681 = smul.addr %s680, 4
        %s682 = scalar_lea.vmem %s10, %s681
        %p683 = scmp.lt.s32.totalorder %s28, 1
        %s684 = scalar_select %p683, %s28, 1
        %s685 = scalar_lea.vmem %s11, %s684
        %p686 = scmp.lt.s32.totalorder %s28, 1
        %s687 = scalar_select %p686, %s28, 1
        %s688 = scalar_lea.vmem %s12, %s687
        %p689 = scmp.lt.s32.totalorder %s28, 1
        %s690 = scalar_select %p689, %s28, 1
        %s691 = scalar_lea.vmem %s13, %s690
        %p693 = scmp.eq.s32.totalorder %s28, 0
        // Predicated region
        $region85: #{forward.1} parent=83 // pred_check
          %p694 = pneg %p693
        $region86: #{forward.1} parent=83 // pred_check_branch
          %696 = sbr.rel (%p694) target = $region88
        $region87: #{forward.1} parent=83 // pred_region
          %v697 = vld [vmem:[%s0] sm:$0xf]
          %v698 = vld [vmem:[%s0 + $0x4] sm:$0xf]
          %v701 = vunpack.c.l.b16 %v697
          %v702 = vunpack.c.l.b16 %v698
          %v703 = vpack.c.b16 %v702, %v701
          %vm705 = vcmask 261120
          %706 = vst.msk [vmem:[#allocation2] sm:$0xff] %vm705, %v703
        $region88: #{forward.1} parent=83 // pred_fallthru
          _
        %v707 = vld [vmem:[#allocation2] sm:$0xff]
        %v708 = vld [vmem:[%s1] sm:$0x1]
        %v709 = vld [vmem:[%s1 + $0x1] sm:$0x1]
        %v710 = vld [vmem:[%s1 + $0x2] sm:$0x1]
        %v711 = vld [vmem:[%s1 + $0x3] sm:$0x1]
        %v712 = vld [vmem:[%s648] sm:$0xf]
        %v713 = vld [vmem:[%s648 + $0x4] sm:$0xf]
        %v714 = vld [vmem:[%s648 + $0x8] sm:$0xf]
        %v715 = vld [vmem:[%s648 + $0xc] sm:$0xf]
        %v716 = vld [vmem:[%s653] sm:$0xf]
        %v717 = vld [vmem:[%s653 + $0x4] sm:$0xf]
        %v718 = vld [vmem:[%s653 + $0x8] sm:$0xf]
        %v719 = vld [vmem:[%s653 + $0xc] sm:$0xf]
        %v720 = vld [vmem:[%s658] sm:$0xf]
        %v721 = vld [vmem:[%s658 + $0x4] sm:$0xf]
        %v722 = vld [vmem:[%s658 + $0x8] sm:$0xf]
        %v723 = vld [vmem:[%s658 + $0xc] sm:$0xf]
        %v724 = vld [vmem:[%s663] sm:$0xf]
        %v725 = vld [vmem:[%s663 + $0x4] sm:$0xf]
        %v726 = vld [vmem:[%s663 + $0x8] sm:$0xf]
        %v727 = vld [vmem:[%s663 + $0xc] sm:$0xf]
        %v732 = vunpack.c.l.b16 %v712
        %v733 = vunpack.c.l.b16 %v713
        %v734 = vunpack.c.l.b16 %v714
        %v735 = vunpack.c.l.b16 %v715
        %v736 = vpack.c.b16 %v733, %v732
        %v737 = vpack.c.b16 %v735, %v734
        %vm740 = vcmask 261120
        %v742 = vsel %vm740, %v707, 0
        %744 = vmatprep.subr.bf16.mxu0 0
        %745 = vmatpush1.bf16.msra.mxu0 %v736
        %746 = vmatprep.subr.bf16.mxu0 0
        %747 = vmatpush1.bf16.msra.mxu0 %v737
        %748 = vmatprep.subr.bf16.mxu0 0
        %749 = vmatpush1.bf16.msra.mxu0 0
        %750 = vmatprep.subr.bf16.mxu0 0
        %751 = vmatpush1.bf16.msra.mxu0 0
        %752 = vmatprep.subr.bf16.mxu0 0
        %753 = vmatpush1.bf16.msra.mxu0 0
        %754 = vmatprep.subr.bf16.mxu0 0
        %755 = vmatpush1.bf16.msra.mxu0 0
        %756 = vmatprep.subr.bf16.mxu0 0
        %757 = vmatpush1.bf16.msra.mxu0 0
        %758 = vmatprep.subr.bf16.mxu0 0
        %759 = vmatpush1.bf16.msra.mxu0 0
        %760 = vmatprep.subr.bf16.mxu0 0
        %761 = vmatpush1.bf16.msra.mxu0 0
        %762 = vmatprep.subr.bf16.mxu0 0
        %763 = vmatpush1.bf16.msra.mxu0 0
        %764 = vmatprep.subr.bf16.mxu0 0
        %765 = vmatpush1.bf16.msra.mxu0 0
        %766 = vmatprep.subr.bf16.mxu0 0
        %767 = vmatpush1.bf16.msra.mxu0 0
        %768 = vmatprep.subr.bf16.mxu0 0
        %769 = vmatpush1.bf16.msra.mxu0 0
        %770 = vmatprep.subr.bf16.mxu0 0
        %771 = vmatpush1.bf16.msra.mxu0 0
        %772 = vmatprep.subr.bf16.mxu0 0
        %773 = vmatpush1.bf16.msra.mxu0 0
        %774 = vmatprep.subr.bf16.mxu0 0
        %775 = vmatpush1.bf16.msra.mxu0 0
        %776 = vmatprep.mubr.bf16.mxu0 0
        %777 = vmatmul.mubr.bf16.gmra.mrb[0].mxu0 %v742
        %v778 = vpop.f32.mrb[0].mxu0
        %v779 = vadd.f32 0.0, %v778
        %v780 = vpop.f32.mrb[0].mxu0
        %v781 = vpop.f32.mrb[0].mxu0
        %v782 = vadd.f32 0.0, %v781
        %v783 = vpop.f32.mrb[0].mxu0
        %784 = vdwg.mxu0
        %v785 = vmul.f32 %v779, 0.25
        %v786 = vmul.f32 %v782, 0.25
        %v791 = vunpack.c.l.b16 %v716
        %v792 = vunpack.c.l.b16 %v717
        %v793 = vunpack.c.l.b16 %v718
        %v794 = vunpack.c.l.b16 %v719
        %v795 = vpack.c.b16 %v792, %v791
        %v796 = vpack.c.b16 %v794, %v793
        %799 = vmatprep.subr.bf16.mxu0 0
        %800 = vmatpush1.bf16.msra.mxu0 %v795
        %801 = vmatprep.subr.bf16.mxu0 0
        %802 = vmatpush1.bf16.msra.mxu0 %v796
        %803 = vmatprep.subr.bf16.mxu0 0
        %804 = vmatpush1.bf16.msra.mxu0 0
        %805 = vmatprep.subr.bf16.mxu0 0
        %806 = vmatpush1.bf16.msra.mxu0 0
        %807 = vmatprep.subr.bf16.mxu0 0
        %808 = vmatpush1.bf16.msra.mxu0 0
        %809 = vmatprep.subr.bf16.mxu0 0
        %810 = vmatpush1.bf16.msra.mxu0 0
        %811 = vmatprep.subr.bf16.mxu0 0
        %812 = vmatpush1.bf16.msra.mxu0 0
        %813 = vmatprep.subr.bf16.mxu0 0
        %814 = vmatpush1.bf16.msra.mxu0 0
        %815 = vmatprep.subr.bf16.mxu0 0
        %816 = vmatpush1.bf16.msra.mxu0 0
        %817 = vmatprep.subr.bf16.mxu0 0
        %818 = vmatpush1.bf16.msra.mxu0 0
        %819 = vmatprep.subr.bf16.mxu0 0
        %820 = vmatpush1.bf16.msra.mxu0 0
        %821 = vmatprep.subr.bf16.mxu0 0
        %822 = vmatpush1.bf16.msra.mxu0 0
        %823 = vmatprep.subr.bf16.mxu0 0
        %824 = vmatpush1.bf16.msra.mxu0 0
        %825 = vmatprep.subr.bf16.mxu0 0
        %826 = vmatpush1.bf16.msra.mxu0 0
        %827 = vmatprep.subr.bf16.mxu0 0
        %828 = vmatpush1.bf16.msra.mxu0 0
        %829 = vmatprep.subr.bf16.mxu0 0
        %830 = vmatpush1.bf16.msra.mxu0 0
        %831 = vmatprep.mubr.bf16.mxu0 0
        %832 = vmatmul.mubr.bf16.gmra.mrb[0].mxu0 %v742
        %v833 = vpop.f32.mrb[0].mxu0
        %v834 = vadd.f32 0.0, %v833
        %v835 = vpop.f32.mrb[0].mxu0
        %v836 = vpop.f32.mrb[0].mxu0
        %v837 = vadd.f32 0.0, %v836
        %v838 = vpop.f32.mrb[0].mxu0
        %839 = vdwg.mxu0
        %v844 = vunpack.c.l.b16 %v720
        %v845 = vunpack.c.l.b16 %v721
        %v846 = vunpack.c.l.b16 %v722
        %v847 = vunpack.c.l.b16 %v723
        %v848 = vpack.c.b16 %v845, %v844
        %v849 = vpack.c.b16 %v847, %v846
        %852 = vmatprep.subr.bf16.mxu0 0
        %853 = vmatpush1.bf16.msra.mxu0 %v848
        %854 = vmatprep.subr.bf16.mxu0 0
        %855 = vmatpush1.bf16.msra.mxu0 %v849
        %856 = vmatprep.subr.bf16.mxu0 0
        %857 = vmatpush1.bf16.msra.mxu0 0
        %858 = vmatprep.subr.bf16.mxu0 0
        %859 = vmatpush1.bf16.msra.mxu0 0
        %860 = vmatprep.subr.bf16.mxu0 0
        %861 = vmatpush1.bf16.msra.mxu0 0
        %862 = vmatprep.subr.bf16.mxu0 0
        %863 = vmatpush1.bf16.msra.mxu0 0
        %864 = vmatprep.subr.bf16.mxu0 0
        %865 = vmatpush1.bf16.msra.mxu0 0
        %866 = vmatprep.subr.bf16.mxu0 0
        %867 = vmatpush1.bf16.msra.mxu0 0
        %868 = vmatprep.subr.bf16.mxu0 0
        %869 = vmatpush1.bf16.msra.mxu0 0
        %870 = vmatprep.subr.bf16.mxu0 0
        %871 = vmatpush1.bf16.msra.mxu0 0
        %872 = vmatprep.subr.bf16.mxu0 0
        %873 = vmatpush1.bf16.msra.mxu0 0
        %874 = vmatprep.subr.bf16.mxu0 0
        %875 = vmatpush1.bf16.msra.mxu0 0
        %876 = vmatprep.subr.bf16.mxu0 0
        %877 = vmatpush1.bf16.msra.mxu0 0
        %878 = vmatprep.subr.bf16.mxu0 0
        %879 = vmatpush1.bf16.msra.mxu0 0
        %880 = vmatprep.subr.bf16.mxu0 0
        %881 = vmatpush1.bf16.msra.mxu0 0
        %882 = vmatprep.subr.bf16.mxu0 0
        %883 = vmatpush1.bf16.msra.mxu0 0
        %884 = vmatprep.mubr.bf16.mxu0 0
        %885 = vmatmul.mubr.bf16.gmra.mrb[0].mxu0 %v742
        %v886 = vpop.f32.mrb[0].mxu0
        %v887 = vadd.f32 0.0, %v886
        %v888 = vpop.f32.mrb[0].mxu0
        %v889 = vpop.f32.mrb[0].mxu0
        %v890 = vadd.f32 0.0, %v889
        %v891 = vpop.f32.mrb[0].mxu0
        %892 = vdwg.mxu0
        %895 = vrot.lane.b32.xlu0 %v785, 112
        %v896 = vpop.permute.xlu0 %895
        %897 = vrot.lane.b32.xlu0 %v786, 112
        %v898 = vpop.permute.xlu0 %897
        %v901 = vpack.c.bf16 %v785, %v785
        %v902 = vpack.c.bf16 %v786, %v786
        %v903 = vpack.c.bf16 %v896, %v896
        %v904 = vpack.c.bf16 %v898, %v898
        %907 = vrot.lane.b32.xlu0 %v834, 112
        %v908 = vpop.permute.xlu0 %907
        %909 = vrot.lane.b32.xlu0 %v837, 112
        %v910 = vpop.permute.xlu0 %909
        %v913 = vpack.c.bf16 %v834, %v834
        %v914 = vpack.c.bf16 %v837, %v837
        %v915 = vpack.c.bf16 %v908, %v908
        %v916 = vpack.c.bf16 %v910, %v910
        %919 = vrot.lane.b32.xlu0 %v887, 112
        %v920 = vpop.permute.xlu0 %919
        %921 = vrot.lane.b32.xlu0 %v890, 112
        %v922 = vpop.permute.xlu0 %921
        %v925 = vpack.c.bf16 %v887, %v887
        %v926 = vpack.c.bf16 %v890, %v890
        %v927 = vpack.c.bf16 %v920, %v920
        %v928 = vpack.c.bf16 %v922, %v922
        %v933 = vlaneseq
        %v934 = vshrl.u32 %v933, 7
        %v935 = vsub.s32 0, %v934
        %v936 = vrot.slane %v708, %v935
        %v937 = vlaneseq
        %v938 = vshrl.u32 %v937, 7
        %v939 = vsub.s32 0, %v938
        %v940 = vrot.slane %v709, %v939
        %v941 = vlaneseq
        %v942 = vshrl.u32 %v941, 7
        %v943 = vsub.s32 0, %v942
        %v944 = vrot.slane %v710, %v943
        %v945 = vlaneseq
        %v946 = vshrl.u32 %v945, 7
        %v947 = vsub.s32 0, %v946
        %v948 = vrot.slane %v711, %v947
        %vm953 = vcmask 130048
        %v955 = vsel %vm953, %v901, 0
        %v958 = vsel %vm953, %v913, 0
        %960 = vmatprep.subr.bf16.mxu0 0
        %961 = vmatpush1.bf16.xpose.msra.mxu0 %v958
        %962 = vmatprep.subr.bf16.mxu0 0
        %963 = vmatpush1.bf16.xpose.msra.mxu0 0
        %964 = vmatprep.subr.bf16.mxu0 0
        %965 = vmatpush1.bf16.xpose.msra.mxu0 0
        %966 = vmatprep.subr.bf16.mxu0 0
        %967 = vmatpush1.bf16.xpose.msra.mxu0 0
        %968 = vmatprep.subr.bf16.mxu0 0
        %969 = vmatpush1.bf16.xpose.msra.mxu0 0
        %970 = vmatprep.subr.bf16.mxu0 0
        %971 = vmatpush1.bf16.xpose.msra.mxu0 0
        %972 = vmatprep.subr.bf16.mxu0 0
        %973 = vmatpush1.bf16.xpose.msra.mxu0 0
        %974 = vmatprep.subr.bf16.mxu0 0
        %975 = vmatpush1.bf16.xpose.msra.mxu0 0
        %976 = vmatprep.subr.bf16.mxu0 0
        %977 = vmatpush1.bf16.xpose.msra.mxu0 0
        %978 = vmatprep.subr.bf16.mxu0 0
        %979 = vmatpush1.bf16.xpose.msra.mxu0 0
        %980 = vmatprep.subr.bf16.mxu0 0
        %981 = vmatpush1.bf16.xpose.msra.mxu0 0
        %982 = vmatprep.subr.bf16.mxu0 0
        %983 = vmatpush1.bf16.xpose.msra.mxu0 0
        %984 = vmatprep.subr.bf16.mxu0 0
        %985 = vmatpush1.bf16.xpose.msra.mxu0 0
        %986 = vmatprep.subr.bf16.mxu0 0
        %987 = vmatpush1.bf16.xpose.msra.mxu0 0
        %988 = vmatprep.subr.bf16.mxu0 0
        %989 = vmatpush1.bf16.xpose.msra.mxu0 0
        %990 = vmatprep.subr.bf16.mxu0 0
        %991 = vmatpush1.bf16.xpose.msra.mxu0 0
        %992 = vmatprep.mubr.bf16.mxu0 0
        %993 = vmatmul.mubr.bf16.gmra.mrb[0].mxu0 %v955
        %v994 = vpop.f32.mrb[0].mxu0
        %v995 = vadd.f32 %v936, %v994
        %v996 = vpop.f32.mrb[0].mxu0
        %v997 = vpop.f32.mrb[0].mxu0
        %v998 = vpop.f32.mrb[0].mxu0
        %999 = vdwg.mxu0
        %v1001 = vsel %vm953, %v902, 0
        %v1004 = vsel %vm953, %v914, 0
        %1006 = vmatprep.subr.bf16.mxu0 0
        %1007 = vmatpush1.bf16.xpose.msra.mxu0 %v1004
        %1008 = vmatprep.subr.bf16.mxu0 0
        %1009 = vmatpush1.bf16.xpose.msra.mxu0 0
        %1010 = vmatprep.subr.bf16.mxu0 0
        %1011 = vmatpush1.bf16.xpose.msra.mxu0 0
        %1012 = vmatprep.subr.bf16.mxu0 0
        %1013 = vmatpush1.bf16.xpose.msra.mxu0 0
        %1014 = vmatprep.subr.bf16.mxu0 0
        %1015 = vmatpush1.bf16.xpose.msra.mxu0 0
        %1016 = vmatprep.subr.bf16.mxu0 0
        %1017 = vmatpush1.bf16.xpose.msra.mxu0 0
        %1018 = vmatprep.subr.bf16.mxu0 0
        %1019 = vmatpush1.bf16.xpose.msra.mxu0 0
        %1020 = vmatprep.subr.bf16.mxu0 0
        %1021 = vmatpush1.bf16.xpose.msra.mxu0 0
        %1022 = vmatprep.subr.bf16.mxu0 0
        %1023 = vmatpush1.bf16.xpose.msra.mxu0 0
        %1024 = vmatprep.subr.bf16.mxu0 0
        %1025 = vmatpush1.bf16.xpose.msra.mxu0 0
        %1026 = vmatprep.subr.bf16.mxu0 0
        %1027 = vmatpush1.bf16.xpose.msra.mxu0 0
        %1028 = vmatprep.subr.bf16.mxu0 0
        %1029 = vmatpush1.bf16.xpose.msra.mxu0 0
        %1030 = vmatprep.subr.bf16.mxu0 0
        %1031 = vmatpush1.bf16.xpose.msra.mxu0 0
        %1032 = vmatprep.subr.bf16.mxu0 0
        %1033 = vmatpush1.bf16.xpose.msra.mxu0 0
        %1034 = vmatprep.subr.bf16.mxu0 0
        %1035 = vmatpush1.bf16.xpose.msra.mxu0 0
        %1036 = vmatprep.subr.bf16.mxu0 0
        %1037 = vmatpush1.bf16.xpose.msra.mxu0 0
        %1038 = vmatprep.mubr.bf16.mxu0 0
        %1039 = vmatmul.mubr.bf16.gmra.mrb[0].mxu0 %v1001
        %v1040 = vpop.f32.mrb[0].mxu0
        %v1041 = vadd.f32 %v940, %v1040
        %v1042 = vpop.f32.mrb[0].mxu0
        %v1043 = vpop.f32.mrb[0].mxu0
        %v1044 = vpop.f32.mrb[0].mxu0
        %1045 = vdwg.mxu0
        %v1047 = vsel %vm953, %v903, 0
        %v1050 = vsel %vm953, %v915, 0
        %1052 = vmatprep.subr.bf16.mxu0 0
        %1053 = vmatpush1.bf16.xpose.msra.mxu0 %v1050
        %1054 = vmatprep.subr.bf16.mxu0 0
        %1055 = vmatpush1.bf16.xpose.msra.mxu0 0
        %1056 = vmatprep.subr.bf16.mxu0 0
        %1057 = vmatpush1.bf16.xpose.msra.mxu0 0
        %1058 = vmatprep.subr.bf16.mxu0 0
        %1059 = vmatpush1.bf16.xpose.msra.mxu0 0
        %1060 = vmatprep.subr.bf16.mxu0 0
        %1061 = vmatpush1.bf16.xpose.msra.mxu0 0
        %1062 = vmatprep.subr.bf16.mxu0 0
        %1063 = vmatpush1.bf16.xpose.msra.mxu0 0
        %1064 = vmatprep.subr.bf16.mxu0 0
        %1065 = vmatpush1.bf16.xpose.msra.mxu0 0
        %1066 = vmatprep.subr.bf16.mxu0 0
        %1067 = vmatpush1.bf16.xpose.msra.mxu0 0
        %1068 = vmatprep.subr.bf16.mxu0 0
        %1069 = vmatpush1.bf16.xpose.msra.mxu0 0
        %1070 = vmatprep.subr.bf16.mxu0 0
        %1071 = vmatpush1.bf16.xpose.msra.mxu0 0
        %1072 = vmatprep.subr.bf16.mxu0 0
        %1073 = vmatpush1.bf16.xpose.msra.mxu0 0
        %1074 = vmatprep.subr.bf16.mxu0 0
        %1075 = vmatpush1.bf16.xpose.msra.mxu0 0
        %1076 = vmatprep.subr.bf16.mxu0 0
        %1077 = vmatpush1.bf16.xpose.msra.mxu0 0
        %1078 = vmatprep.subr.bf16.mxu0 0
        %1079 = vmatpush1.bf16.xpose.msra.mxu0 0
        %1080 = vmatprep.subr.bf16.mxu0 0
        %1081 = vmatpush1.bf16.xpose.msra.mxu0 0
        %1082 = vmatprep.subr.bf16.mxu0 0
        %1083 = vmatpush1.bf16.xpose.msra.mxu0 0
        %1084 = vmatprep.mubr.bf16.mxu0 0
        %1085 = vmatmul.mubr.bf16.gmra.mrb[0].mxu0 %v1047
        %v1086 = vpop.f32.mrb[0].mxu0
        %v1087 = vadd.f32 %v944, %v1086
        %v1088 = vpop.f32.mrb[0].mxu0
        %v1089 = vpop.f32.mrb[0].mxu0
        %v1090 = vpop.f32.mrb[0].mxu0
        %1091 = vdwg.mxu0
        %v1093 = vsel %vm953, %v904, 0
        %v1096 = vsel %vm953, %v916, 0
        %1098 = vmatprep.subr.bf16.mxu0 0
        %1099 = vmatpush1.bf16.xpose.msra.mxu0 %v1096
        %1100 = vmatprep.subr.bf16.mxu0 0
        %1101 = vmatpush1.bf16.xpose.msra.mxu0 0
        %1102 = vmatprep.subr.bf16.mxu0 0
        %1103 = vmatpush1.bf16.xpose.msra.mxu0 0
        %1104 = vmatprep.subr.bf16.mxu0 0
        %1105 = vmatpush1.bf16.xpose.msra.mxu0 0
        %1106 = vmatprep.subr.bf16.mxu0 0
        %1107 = vmatpush1.bf16.xpose.msra.mxu0 0
        %1108 = vmatprep.subr.bf16.mxu0 0
        %1109 = vmatpush1.bf16.xpose.msra.mxu0 0
        %1110 = vmatprep.subr.bf16.mxu0 0
        %1111 = vmatpush1.bf16.xpose.msra.mxu0 0
        %1112 = vmatprep.subr.bf16.mxu0 0
        %1113 = vmatpush1.bf16.xpose.msra.mxu0 0
        %1114 = vmatprep.subr.bf16.mxu0 0
        %1115 = vmatpush1.bf16.xpose.msra.mxu0 0
        %1116 = vmatprep.subr.bf16.mxu0 0
        %1117 = vmatpush1.bf16.xpose.msra.mxu0 0
        %1118 = vmatprep.subr.bf16.mxu0 0
        %1119 = vmatpush1.bf16.xpose.msra.mxu0 0
        %1120 = vmatprep.subr.bf16.mxu0 0
        %1121 = vmatpush1.bf16.xpose.msra.mxu0 0
        %1122 = vmatprep.subr.bf16.mxu0 0
        %1123 = vmatpush1.bf16.xpose.msra.mxu0 0
        %1124 = vmatprep.subr.bf16.mxu0 0
        %1125 = vmatpush1.bf16.xpose.msra.mxu0 0
        %1126 = vmatprep.subr.bf16.mxu0 0
        %1127 = vmatpush1.bf16.xpose.msra.mxu0 0
        %1128 = vmatprep.subr.bf16.mxu0 0
        %1129 = vmatpush1.bf16.xpose.msra.mxu0 0
        %1130 = vmatprep.mubr.bf16.mxu0 0
        %1131 = vmatmul.mubr.bf16.gmra.mrb[0].mxu0 %v1093
        %v1132 = vpop.f32.mrb[0].mxu0
        %v1133 = vadd.f32 %v948, %v1132
        %v1134 = vpop.f32.mrb[0].mxu0
        %v1135 = vpop.f32.mrb[0].mxu0
        %v1136 = vpop.f32.mrb[0].mxu0
        %1137 = vdwg.mxu0
        %vm1138 = vcmask 64512
        %v1139 = vsel %vm1138, %v995, -inf
        %1140 = vmax.xlane.f32.xlu0 %v1139
        %v1141 = vpop.xlane.xlu0 %1140
        %v1142 = vsel %vm1138, %v1041, -inf
        %1143 = vmax.xlane.f32.xlu0 %v1142
        %v1144 = vpop.xlane.xlu0 %1143
        %v1145 = vsel %vm1138, %v1087, -inf
        %1146 = vmax.xlane.f32.xlu0 %v1145
        %v1147 = vpop.xlane.xlu0 %1146
        %v1148 = vsel %vm1138, %v1133, -inf
        %1149 = vmax.xlane.f32.xlu0 %v1148
        %v1150 = vpop.xlane.xlu0 %1149
        %v1151 = vsub.f32 %v995, %v1141
        %v1152 = vsub.f32 %v1041, %v1144
        %v1153 = vsub.f32 %v1087, %v1147
        %v1154 = vsub.f32 %v1133, %v1150
        %v1155 = vmul.f32 %v1151, 1.442695
        %v1156 = vpow.pop %v1155
        %v1157 = vmul.f32 %v1152, 1.442695
        %v1158 = vpow.pop %v1157
        %v1159 = vmul.f32 %v1153, 1.442695
        %v1160 = vpow.pop %v1159
        %v1161 = vmul.f32 %v1154, 1.442695
        %v1162 = vpow.pop %v1161
        %v1163 = vsel %vm1138, %v1156, 0.0
        %1164 = vadd.xlane.f32.xlu0 %v1163
        %v1165 = vpop.xlane.xlu0 %1164
        %v1166 = vsel %vm1138, %v1158, 0.0
        %1167 = vadd.xlane.f32.xlu0 %v1166
        %v1168 = vpop.xlane.xlu0 %1167
        %v1169 = vsel %vm1138, %v1160, 0.0
        %1170 = vadd.xlane.f32.xlu0 %v1169
        %v1171 = vpop.xlane.xlu0 %1170
        %v1172 = vsel %vm1138, %v1162, 0.0
        %1173 = vadd.xlane.f32.xlu0 %v1172
        %v1174 = vpop.xlane.xlu0 %1173
        %v1175 = vrcp.pop %v1165
        %v1176 = vrcp.pop %v1168
        %v1177 = vrcp.pop %v1171
        %v1178 = vrcp.pop %v1174
        %v1179 = vmul.f32 %v1156, %v1175
        %v1180 = vmul.f32 %v1158, %v1176
        %v1181 = vmul.f32 %v1160, %v1177
        %v1182 = vmul.f32 %v1162, %v1178
        %v1183 = vpack.c.bf16 %v1179, %v1179
        %v1184 = vpack.c.bf16 %v1180, %v1180
        %v1185 = vpack.c.bf16 %v1181, %v1181
        %v1186 = vpack.c.bf16 %v1182, %v1182
        %v1188 = vsel %vm1138, %v1183, 0
        %vm1190 = vcmask 1043456
        %v1192 = vsel %vm1190, %v925, 0
        %1194 = vmatprep.subr.bf16.mxu0 0
        %1195 = vmatpush1.bf16.msra.mxu0 %v1192
        %1196 = vmatprep.subr.bf16.mxu0 0
        %1197 = vmatpush1.bf16.msra.mxu0 0
        %1198 = vmatprep.subr.bf16.mxu0 0
        %1199 = vmatpush1.bf16.msra.mxu0 0
        %1200 = vmatprep.subr.bf16.mxu0 0
        %1201 = vmatpush1.bf16.msra.mxu0 0
        %1202 = vmatprep.subr.bf16.mxu0 0
        %1203 = vmatpush1.bf16.msra.mxu0 0
        %1204 = vmatprep.subr.bf16.mxu0 0
        %1205 = vmatpush1.bf16.msra.mxu0 0
        %1206 = vmatprep.subr.bf16.mxu0 0
        %1207 = vmatpush1.bf16.msra.mxu0 0
        %1208 = vmatprep.subr.bf16.mxu0 0
        %1209 = vmatpush1.bf16.msra.mxu0 0
        %1210 = vmatprep.subr.bf16.mxu0 0
        %1211 = vmatpush1.bf16.msra.mxu0 0
        %1212 = vmatprep.subr.bf16.mxu0 0
        %1213 = vmatpush1.bf16.msra.mxu0 0
        %1214 = vmatprep.subr.bf16.mxu0 0
        %1215 = vmatpush1.bf16.msra.mxu0 0
        %1216 = vmatprep.subr.bf16.mxu0 0
        %1217 = vmatpush1.bf16.msra.mxu0 0
        %1218 = vmatprep.subr.bf16.mxu0 0
        %1219 = vmatpush1.bf16.msra.mxu0 0
        %1220 = vmatprep.subr.bf16.mxu0 0
        %1221 = vmatpush1.bf16.msra.mxu0 0
        %1222 = vmatprep.subr.bf16.mxu0 0
        %1223 = vmatpush1.bf16.msra.mxu0 0
        %1224 = vmatprep.subr.bf16.mxu0 0
        %1225 = vmatpush1.bf16.msra.mxu0 0
        %1226 = vmatprep.mubr.bf16.mxu0 0
        %1227 = vmatmul.mubr.bf16.gmra.mrb[0].mxu0 %v1188
        %v1228 = vpop.f32.mrb[0].mxu0
        %v1229 = vadd.f32 0.0, %v1228
        %v1230 = vpop.f32.mrb[0].mxu0
        %v1231 = vpop.f32.mrb[0].mxu0
        %v1232 = vpop.f32.mrb[0].mxu0
        %1233 = vdwg.mxu0
        %v1235 = vsel %vm1138, %v1184, 0
        %v1238 = vsel %vm1190, %v926, 0
        %1240 = vmatprep.subr.bf16.mxu0 0
        %1241 = vmatpush1.bf16.msra.mxu0 %v1238
        %1242 = vmatprep.subr.bf16.mxu0 0
        %1243 = vmatpush1.bf16.msra.mxu0 0
        %1244 = vmatprep.subr.bf16.mxu0 0
        %1245 = vmatpush1.bf16.msra.mxu0 0
        %1246 = vmatprep.subr.bf16.mxu0 0
        %1247 = vmatpush1.bf16.msra.mxu0 0
        %1248 = vmatprep.subr.bf16.mxu0 0
        %1249 = vmatpush1.bf16.msra.mxu0 0
        %1250 = vmatprep.subr.bf16.mxu0 0
        %1251 = vmatpush1.bf16.msra.mxu0 0
        %1252 = vmatprep.subr.bf16.mxu0 0
        %1253 = vmatpush1.bf16.msra.mxu0 0
        %1254 = vmatprep.subr.bf16.mxu0 0
        %1255 = vmatpush1.bf16.msra.mxu0 0
        %1256 = vmatprep.subr.bf16.mxu0 0
        %1257 = vmatpush1.bf16.msra.mxu0 0
        %1258 = vmatprep.subr.bf16.mxu0 0
        %1259 = vmatpush1.bf16.msra.mxu0 0
        %1260 = vmatprep.subr.bf16.mxu0 0
        %1261 = vmatpush1.bf16.msra.mxu0 0
        %1262 = vmatprep.subr.bf16.mxu0 0
        %1263 = vmatpush1.bf16.msra.mxu0 0
        %1264 = vmatprep.subr.bf16.mxu0 0
        %1265 = vmatpush1.bf16.msra.mxu0 0
        %1266 = vmatprep.subr.bf16.mxu0 0
        %1267 = vmatpush1.bf16.msra.mxu0 0
        %1268 = vmatprep.subr.bf16.mxu0 0
        %1269 = vmatpush1.bf16.msra.mxu0 0
        %1270 = vmatprep.subr.bf16.mxu0 0
        %1271 = vmatpush1.bf16.msra.mxu0 0
        %1272 = vmatprep.mubr.bf16.mxu0 0
        %1273 = vmatmul.mubr.bf16.gmra.mrb[0].mxu0 %v1235
        %v1274 = vpop.f32.mrb[0].mxu0
        %v1275 = vadd.f32 0.0, %v1274
        %v1276 = vpop.f32.mrb[0].mxu0
        %v1277 = vpop.f32.mrb[0].mxu0
        %v1278 = vpop.f32.mrb[0].mxu0
        %1279 = vdwg.mxu0
        %v1281 = vsel %vm1138, %v1185, 0
        %v1284 = vsel %vm1190, %v927, 0
        %1286 = vmatprep.subr.bf16.mxu0 0
        %1287 = vmatpush1.bf16.msra.mxu0 %v1284
        %1288 = vmatprep.subr.bf16.mxu0 0
        %1289 = vmatpush1.bf16.msra.mxu0 0
        %1290 = vmatprep.subr.bf16.mxu0 0
        %1291 = vmatpush1.bf16.msra.mxu0 0
        %1292 = vmatprep.subr.bf16.mxu0 0
        %1293 = vmatpush1.bf16.msra.mxu0 0
        %1294 = vmatprep.subr.bf16.mxu0 0
        %1295 = vmatpush1.bf16.msra.mxu0 0
        %1296 = vmatprep.subr.bf16.mxu0 0
        %1297 = vmatpush1.bf16.msra.mxu0 0
        %1298 = vmatprep.subr.bf16.mxu0 0
        %1299 = vmatpush1.bf16.msra.mxu0 0
        %1300 = vmatprep.subr.bf16.mxu0 0
        %1301 = vmatpush1.bf16.msra.mxu0 0
        %1302 = vmatprep.subr.bf16.mxu0 0
        %1303 = vmatpush1.bf16.msra.mxu0 0
        %1304 = vmatprep.subr.bf16.mxu0 0
        %1305 = vmatpush1.bf16.msra.mxu0 0
        %1306 = vmatprep.subr.bf16.mxu0 0
        %1307 = vmatpush1.bf16.msra.mxu0 0
        %1308 = vmatprep.subr.bf16.mxu0 0
        %1309 = vmatpush1.bf16.msra.mxu0 0
        %1310 = vmatprep.subr.bf16.mxu0 0
        %1311 = vmatpush1.bf16.msra.mxu0 0
        %1312 = vmatprep.subr.bf16.mxu0 0
        %1313 = vmatpush1.bf16.msra.mxu0 0
        %1314 = vmatprep.subr.bf16.mxu0 0
        %1315 = vmatpush1.bf16.msra.mxu0 0
        %1316 = vmatprep.subr.bf16.mxu0 0
        %1317 = vmatpush1.bf16.msra.mxu0 0
        %1318 = vmatprep.mubr.bf16.mxu0 0
        %1319 = vmatmul.mubr.bf16.gmra.mrb[0].mxu0 %v1281
        %v1320 = vpop.f32.mrb[0].mxu0
        %v1321 = vadd.f32 0.0, %v1320
        %v1322 = vpop.f32.mrb[0].mxu0
        %v1323 = vpop.f32.mrb[0].mxu0
        %v1324 = vpop.f32.mrb[0].mxu0
        %1325 = vdwg.mxu0
        %v1327 = vsel %vm1138, %v1186, 0
        %v1330 = vsel %vm1190, %v928, 0
        %1332 = vmatprep.subr.bf16.mxu0 0
        %1333 = vmatpush1.bf16.msra.mxu0 %v1330
        %1334 = vmatprep.subr.bf16.mxu0 0
        %1335 = vmatpush1.bf16.msra.mxu0 0
        %1336 = vmatprep.subr.bf16.mxu0 0
        %1337 = vmatpush1.bf16.msra.mxu0 0
        %1338 = vmatprep.subr.bf16.mxu0 0
        %1339 = vmatpush1.bf16.msra.mxu0 0
        %1340 = vmatprep.subr.bf16.mxu0 0
        %1341 = vmatpush1.bf16.msra.mxu0 0
        %1342 = vmatprep.subr.bf16.mxu0 0
        %1343 = vmatpush1.bf16.msra.mxu0 0
        %1344 = vmatprep.subr.bf16.mxu0 0
        %1345 = vmatpush1.bf16.msra.mxu0 0
        %1346 = vmatprep.subr.bf16.mxu0 0
        %1347 = vmatpush1.bf16.msra.mxu0 0
        %1348 = vmatprep.subr.bf16.mxu0 0
        %1349 = vmatpush1.bf16.msra.mxu0 0
        %1350 = vmatprep.subr.bf16.mxu0 0
        %1351 = vmatpush1.bf16.msra.mxu0 0
        %1352 = vmatprep.subr.bf16.mxu0 0
        %1353 = vmatpush1.bf16.msra.mxu0 0
        %1354 = vmatprep.subr.bf16.mxu0 0
        %1355 = vmatpush1.bf16.msra.mxu0 0
        %1356 = vmatprep.subr.bf16.mxu0 0
        %1357 = vmatpush1.bf16.msra.mxu0 0
        %1358 = vmatprep.subr.bf16.mxu0 0
        %1359 = vmatpush1.bf16.msra.mxu0 0
        %1360 = vmatprep.subr.bf16.mxu0 0
        %1361 = vmatpush1.bf16.msra.mxu0 0
        %1362 = vmatprep.subr.bf16.mxu0 0
        %1363 = vmatpush1.bf16.msra.mxu0 0
        %1364 = vmatprep.mubr.bf16.mxu0 0
        %1365 = vmatmul.mubr.bf16.gmra.mrb[0].mxu0 %v1327
        %v1366 = vpop.f32.mrb[0].mxu0
        %v1367 = vadd.f32 0.0, %v1366
        %v1368 = vpop.f32.mrb[0].mxu0
        %v1369 = vpop.f32.mrb[0].mxu0
        %v1370 = vpop.f32.mrb[0].mxu0
        %1371 = vdwg.mxu0
        %1374 = vrot.lane.b32.xlu0 %v1321, 16
        %v1375 = vpop.permute.xlu0 %1374
        %1376 = vrot.lane.b32.xlu0 %v1367, 16
        %v1377 = vpop.permute.xlu0 %1376
        %v1380 = vsel %vm953, %v1229, %v1375
        %v1381 = vsel %vm953, %v1275, %v1377
        %v1382 = vpack.c.bf16 %v1381, %v1380
        %v1387 = vunpack.c.l.b16 %v724
        %v1388 = vunpack.c.l.b16 %v725
        %v1389 = vunpack.c.l.b16 %v726
        %v1390 = vunpack.c.l.b16 %v727
        %v1391 = vpack.c.b16 %v1388, %v1387
        %v1392 = vpack.c.b16 %v1390, %v1389
        %v1396 = vsel %vm740, %v1382, 0
        %1398 = vmatprep.subr.bf16.mxu0 0
        %1399 = vmatpush1.bf16.msra.mxu0 %v1391
        %1400 = vmatprep.subr.bf16.mxu0 0
        %1401 = vmatpush1.bf16.msra.mxu0 %v1392
        %1402 = vmatprep.subr.bf16.mxu0 0
        %1403 = vmatpush1.bf16.msra.mxu0 0
        %1404 = vmatprep.subr.bf16.mxu0 0
        %1405 = vmatpush1.bf16.msra.mxu0 0
        %1406 = vmatprep.subr.bf16.mxu0 0
        %1407 = vmatpush1.bf16.msra.mxu0 0
        %1408 = vmatprep.subr.bf16.mxu0 0
        %1409 = vmatpush1.bf16.msra.mxu0 0
        %1410 = vmatprep.subr.bf16.mxu0 0
        %1411 = vmatpush1.bf16.msra.mxu0 0
        %1412 = vmatprep.subr.bf16.mxu0 0
        %1413 = vmatpush1.bf16.msra.mxu0 0
        %1414 = vmatprep.subr.bf16.mxu0 0
        %1415 = vmatpush1.bf16.msra.mxu0 0
        %1416 = vmatprep.subr.bf16.mxu0 0
        %1417 = vmatpush1.bf16.msra.mxu0 0
        %1418 = vmatprep.subr.bf16.mxu0 0
        %1419 = vmatpush1.bf16.msra.mxu0 0
        %1420 = vmatprep.subr.bf16.mxu0 0
        %1421 = vmatpush1.bf16.msra.mxu0 0
        %1422 = vmatprep.subr.bf16.mxu0 0
        %1423 = vmatpush1.bf16.msra.mxu0 0
        %1424 = vmatprep.subr.bf16.mxu0 0
        %1425 = vmatpush1.bf16.msra.mxu0 0
        %1426 = vmatprep.subr.bf16.mxu0 0
        %1427 = vmatpush1.bf16.msra.mxu0 0
        %1428 = vmatprep.subr.bf16.mxu0 0
        %1429 = vmatpush1.bf16.msra.mxu0 0
        %1430 = vmatprep.mubr.bf16.mxu0 0
        %1431 = vmatmul.mubr.bf16.gmra.mrb[0].mxu0 %v1396
        %v1432 = vpop.f32.mrb[0].mxu0
        %v1433 = vadd.f32 0.0, %v1432
        %v1434 = vpop.f32.mrb[0].mxu0
        %v1435 = vpop.f32.mrb[0].mxu0
        %v1436 = vadd.f32 0.0, %v1435
        %v1437 = vpop.f32.mrb[0].mxu0
        %1438 = vdwg.mxu0
        %v1439 = vunpack.c.l.bf16 %v707
        %v1440 = vunpack.c.h.bf16 %v707
        %v1441 = vadd.f32 %v1439, %v1433
        %v1442 = vadd.f32 %v1440, %v1436
        %v1443 = vld [vmem:[%s666] sm:$0x1]
        %v1444 = vld [vmem:[%s669] sm:$0x1]
        %v1445 = vsel %vm740, %v1441, 0.0
        %1446 = vadd.xlane.f32.xlu0 %v1445
        %v1447 = vpop.xlane.xlu0 %1446
        %v1448 = vsel %vm740, %v1442, 0.0
        %1449 = vadd.xlane.f32.xlu0 %v1448
        %v1450 = vpop.xlane.xlu0 %1449
        %v1451 = vrcp.pop 32.0
        %v1452 = vmul.f32 %v1447, %v1451
        %v1453 = vmul.f32 %v1450, %v1451
        %v1454 = vsub.f32 %v1441, %v1452
        %v1455 = vsub.f32 %v1442, %v1453
        %v1456 = vmul.f32 %v1454, %v1454
        %v1457 = vmul.f32 %v1455, %v1455
        %v1458 = vsel %vm740, %v1456, 0.0
        %1459 = vadd.xlane.f32.xlu0 %v1458
        %v1460 = vpop.xlane.xlu0 %1459
        %v1461 = vsel %vm740, %v1457, 0.0
        %1462 = vadd.xlane.f32.xlu0 %v1461
        %v1463 = vpop.xlane.xlu0 %1462
        %v1464 = vmul.f32 %v1460, %v1451
        %v1465 = vmul.f32 %v1463, %v1451
        %v1466 = vadd.f32 %v1464, 1e-12
        %v1467 = vadd.f32 %v1465, 1e-12
        %v1468 = vrsqrt.pop %v1466
        %v1469 = vrsqrt.pop %v1467
        %v1470 = vmul.f32 %v1454, %v1468
        %v1471 = vmul.f32 %v1455, %v1469
        %v1473 = vlaneseq
        %v1474 = vshrl.u32 %v1473, 7
        %v1475 = vsub.s32 0, %v1474
        %v1476 = vrot.slane %v1443, %v1475
        %v1478 = vmul.f32 %v1470, %v1476
        %v1479 = vmul.f32 %v1471, %v1476
        %v1481 = vlaneseq
        %v1482 = vshrl.u32 %v1481, 7
        %v1483 = vsub.s32 0, %v1482
        %v1484 = vrot.slane %v1444, %v1483
        %v1486 = vadd.f32 %v1478, %v1484
        %v1487 = vadd.f32 %v1479, %v1484
        %v1488 = vpack.c.bf16 %v1487, %v1486
        %v1489 = vld [vmem:[%s674] sm:$0xf]
        %v1490 = vld [vmem:[%s674 + $0x4] sm:$0xf]
        %v1491 = vld [vmem:[%s674 + $0x8] sm:$0xf]
        %v1492 = vld [vmem:[%s674 + $0xc] sm:$0xf]
        %v1493 = vld [vmem:[%s677] sm:$0x1]
        %v1495 = vlaneseq
        %v1496 = vshrl.u32 %v1495, 7
        %v1497 = vsub.s32 0, %v1496
        %v1498 = vrot.slane %v1493, %v1497
        %v1504 = vunpack.c.l.b16 %v1489
        %v1505 = vunpack.c.l.b16 %v1490
        %v1506 = vunpack.c.l.b16 %v1491
        %v1507 = vunpack.c.l.b16 %v1492
        %v1508 = vpack.c.b16 %v1505, %v1504
        %v1509 = vpack.c.b16 %v1507, %v1506
        %v1513 = vsel %vm740, %v1488, 0
        %1515 = vmatprep.subr.bf16.mxu0 0
        %1516 = vmatpush1.bf16.msra.mxu0 %v1508
        %1517 = vmatprep.subr.bf16.mxu0 0
        %1518 = vmatpush1.bf16.msra.mxu0 %v1509
        %1519 = vmatprep.subr.bf16.mxu0 0
        %1520 = vmatpush1.bf16.msra.mxu0 0
        %1521 = vmatprep.subr.bf16.mxu0 0
        %1522 = vmatpush1.bf16.msra.mxu0 0
        %1523 = vmatprep.subr.bf16.mxu0 0
        %1524 = vmatpush1.bf16.msra.mxu0 0
        %1525 = vmatprep.subr.bf16.mxu0 0
        %1526 = vmatpush1.bf16.msra.mxu0 0
        %1527 = vmatprep.subr.bf16.mxu0 0
        %1528 = vmatpush1.bf16.msra.mxu0 0
        %1529 = vmatprep.subr.bf16.mxu0 0
        %1530 = vmatpush1.bf16.msra.mxu0 0
        %1531 = vmatprep.subr.bf16.mxu0 0
        %1532 = vmatpush1.bf16.msra.mxu0 0
        %1533 = vmatprep.subr.bf16.mxu0 0
        %1534 = vmatpush1.bf16.msra.mxu0 0
        %1535 = vmatprep.subr.bf16.mxu0 0
        %1536 = vmatpush1.bf16.msra.mxu0 0
        %1537 = vmatprep.subr.bf16.mxu0 0
        %1538 = vmatpush1.bf16.msra.mxu0 0
        %1539 = vmatprep.subr.bf16.mxu0 0
        %1540 = vmatpush1.bf16.msra.mxu0 0
        %1541 = vmatprep.subr.bf16.mxu0 0
        %1542 = vmatpush1.bf16.msra.mxu0 0
        %1543 = vmatprep.subr.bf16.mxu0 0
        %1544 = vmatpush1.bf16.msra.mxu0 0
        %1545 = vmatprep.subr.bf16.mxu0 0
        %1546 = vmatpush1.bf16.msra.mxu0 0
        %1547 = vmatprep.mubr.bf16.mxu0 0
        %1548 = vmatmul.mubr.bf16.gmra.mrb[0].mxu0 %v1513
        %v1549 = vpop.f32.mrb[0].mxu0
        %v1550 = vadd.f32 %v1498, %v1549
        %v1551 = vpop.f32.mrb[0].mxu0
        %v1552 = vpop.f32.mrb[0].mxu0
        %v1553 = vadd.f32 %v1498, %v1552
        %v1554 = vpop.f32.mrb[0].mxu0
        %1555 = vdwg.mxu0
        %v1556 = vmul.f32 %v1550, 0.5
        %v1557 = vmul.f32 %v1553, 0.5
        %v1558 = vmul.f32 %v1550, 0.044715
        %v1559 = vmul.f32 %v1553, 0.044715
        %v1560 = vmul.f32 %v1558, %v1550
        %v1561 = vmul.f32 %v1559, %v1553
        %v1562 = vmul.f32 %v1560, %v1550
        %v1563 = vmul.f32 %v1561, %v1553
        %v1564 = vadd.f32 %v1550, %v1562
        %v1565 = vadd.f32 %v1553, %v1563
        %v1566 = vmul.f32 %v1564, 0.7978846
        %v1567 = vmul.f32 %v1565, 0.7978846
        %v1568 = vtanh.pop %v1566
        %v1569 = vtanh.pop %v1567
        %v1570 = vadd.f32 %v1568, 1.0
        %v1571 = vadd.f32 %v1569, 1.0
        %v1572 = vmul.f32 %v1556, %v1570
        %v1573 = vmul.f32 %v1557, %v1571
        %v1574 = vpack.c.bf16 %v1573, %v1572
        %v1575 = vld [vmem:[%s682] sm:$0xf]
        %v1576 = vld [vmem:[%s682 + $0x4] sm:$0xf]
        %v1577 = vld [vmem:[%s682 + $0x8] sm:$0xf]
        %v1578 = vld [vmem:[%s682 + $0xc] sm:$0xf]
        %v1579 = vld [vmem:[%s682 + $0x10] sm:$0xf]
        %v1580 = vld [vmem:[%s682 + $0x14] sm:$0xf]
        %v1581 = vld [vmem:[%s682 + $0x18] sm:$0xf]
        %v1582 = vld [vmem:[%s682 + $0x1c] sm:$0xf]
        %v1583 = vld [vmem:[%s685] sm:$0x1]
        %v1585 = vlaneseq
        %v1586 = vshrl.u32 %v1585, 7
        %v1587 = vsub.s32 0, %v1586
        %v1588 = vrot.slane %v1583, %v1587
        %v1598 = vunpack.c.l.b16 %v1575
        %v1599 = vunpack.c.l.b16 %v1576
        %v1600 = vunpack.c.l.b16 %v1577
        %v1601 = vunpack.c.l.b16 %v1578
        %v1602 = vunpack.c.l.b16 %v1579
        %v1603 = vunpack.c.l.b16 %v1580
        %v1604 = vunpack.c.l.b16 %v1581
        %v1605 = vunpack.c.l.b16 %v1582
        %v1606 = vpack.c.b16 %v1599, %v1598
        %v1607 = vpack.c.b16 %v1601, %v1600
        %v1608 = vpack.c.b16 %v1603, %v1602
        %v1609 = vpack.c.b16 %v1605, %v1604
        %vm1614 = vcmask 523264
        %v1616 = vsel %vm1614, %v1574, 0
        %1618 = vmatprep.subr.bf16.mxu0 0
        %1619 = vmatpush1.bf16.msra.mxu0 %v1606
        %1620 = vmatprep.subr.bf16.mxu0 0
        %1621 = vmatpush1.bf16.msra.mxu0 %v1607
        %1622 = vmatprep.subr.bf16.mxu0 0
        %1623 = vmatpush1.bf16.msra.mxu0 %v1608
        %1624 = vmatprep.subr.bf16.mxu0 0
        %1625 = vmatpush1.bf16.msra.mxu0 %v1609
        %1626 = vmatprep.subr.bf16.mxu0 0
        %1627 = vmatpush1.bf16.msra.mxu0 0
        %1628 = vmatprep.subr.bf16.mxu0 0
        %1629 = vmatpush1.bf16.msra.mxu0 0
        %1630 = vmatprep.subr.bf16.mxu0 0
        %1631 = vmatpush1.bf16.msra.mxu0 0
        %1632 = vmatprep.subr.bf16.mxu0 0
        %1633 = vmatpush1.bf16.msra.mxu0 0
        %1634 = vmatprep.subr.bf16.mxu0 0
        %1635 = vmatpush1.bf16.msra.mxu0 0
        %1636 = vmatprep.subr.bf16.mxu0 0
        %1637 = vmatpush1.bf16.msra.mxu0 0
        %1638 = vmatprep.subr.bf16.mxu0 0
        %1639 = vmatpush1.bf16.msra.mxu0 0
        %1640 = vmatprep.subr.bf16.mxu0 0
        %1641 = vmatpush1.bf16.msra.mxu0 0
        %1642 = vmatprep.subr.bf16.mxu0 0
        %1643 = vmatpush1.bf16.msra.mxu0 0
        %1644 = vmatprep.subr.bf16.mxu0 0
        %1645 = vmatpush1.bf16.msra.mxu0 0
        %1646 = vmatprep.subr.bf16.mxu0 0
        %1647 = vmatpush1.bf16.msra.mxu0 0
        %1648 = vmatprep.subr.bf16.mxu0 0
        %1649 = vmatpush1.bf16.msra.mxu0 0
        %1650 = vmatprep.mubr.bf16.mxu0 0
        %1651 = vmatmul.mubr.bf16.gmra.mrb[0].mxu0 %v1616
        %v1652 = vpop.f32.mrb[0].mxu0
        %v1653 = vadd.f32 %v1588, %v1652
        %v1654 = vpop.f32.mrb[0].mxu0
        %v1655 = vpop.f32.mrb[0].mxu0
        %v1656 = vadd.f32 %v1588, %v1655
        %v1657 = vpop.f32.mrb[0].mxu0
        %1658 = vdwg.mxu0
        %v1659 = vadd.f32 %v1486, %v1653
        %v1660 = vadd.f32 %v1487, %v1656
        %v1661 = vld [vmem:[%s688] sm:$0x1]
        %v1662 = vld [vmem:[%s691] sm:$0x1]
        %v1663 = vsel %vm740, %v1659, 0.0
        %1664 = vadd.xlane.f32.xlu0 %v1663
        %v1665 = vpop.xlane.xlu0 %1664
        %v1666 = vsel %vm740, %v1660, 0.0
        %1667 = vadd.xlane.f32.xlu0 %v1666
        %v1668 = vpop.xlane.xlu0 %1667
        %v1669 = vmul.f32 %v1665, %v1451
        %v1670 = vmul.f32 %v1668, %v1451
        %v1671 = vsub.f32 %v1659, %v1669
        %v1672 = vsub.f32 %v1660, %v1670
        %v1673 = vmul.f32 %v1671, %v1671
        %v1674 = vmul.f32 %v1672, %v1672
        %v1675 = vsel %vm740, %v1673, 0.0
        %1676 = vadd.xlane.f32.xlu0 %v1675
        %v1677 = vpop.xlane.xlu0 %1676
        %v1678 = vsel %vm740, %v1674, 0.0
        %1679 = vadd.xlane.f32.xlu0 %v1678
        %v1680 = vpop.xlane.xlu0 %1679
        %v1681 = vmul.f32 %v1677, %v1451
        %v1682 = vmul.f32 %v1680, %v1451
        %v1683 = vadd.f32 %v1681, 1e-12
        %v1684 = vadd.f32 %v1682, 1e-12
        %v1685 = vrsqrt.pop %v1683
        %v1686 = vrsqrt.pop %v1684
        %v1687 = vmul.f32 %v1671, %v1685
        %v1688 = vmul.f32 %v1672, %v1686
        %v1690 = vlaneseq
        %v1691 = vshrl.u32 %v1690, 7
        %v1692 = vsub.s32 0, %v1691
        %v1693 = vrot.slane %v1661, %v1692
        %v1695 = vmul.f32 %v1687, %v1693
        %v1696 = vmul.f32 %v1688, %v1693
        %v1698 = vlaneseq
        %v1699 = vshrl.u32 %v1698, 7
        %v1700 = vsub.s32 0, %v1699
        %v1701 = vrot.slane %v1662, %v1700
        %v1703 = vadd.f32 %v1695, %v1701
        %v1704 = vadd.f32 %v1696, %v1701
        %v1705 = vpack.c.bf16 %v1704, %v1703
        %1706 = vst.msk [vmem:[#allocation2] sm:$0xff] %vm740, %v1705
        %p1707 = scmp.eq.s32.totalorder %s28, 1
        // Predicated region
        $region89: #{forward.1} parent=83 // pred_check
          %p1708 = pneg %p1707
        $region90: #{forward.1} parent=83 // pred_check_branch
          %1710 = sbr.rel (%p1708) target = $region92
        $region91: #{forward.1} parent=83 // pred_region
          %v1711 = vsel %vm740, %v1703, 0.0
          %v1712 = vrot.slane %v1711, 4
          %v1713 = vadd.f32 %v1711, %v1712
          %v1714 = vrot.slane %v1713, 2
          %v1715 = vadd.f32 %v1713, %v1714
          %v1716 = vrot.slane %v1715, 1
          %v1717 = vadd.f32 %v1715, %v1716
          %v1718 = vsel %vm740, %v1704, 0.0
          %v1719 = vrot.slane %v1718, 4
          %v1720 = vadd.f32 %v1718, %v1719
          %v1721 = vrot.slane %v1720, 2
          %v1722 = vadd.f32 %v1720, %v1721
          %v1723 = vrot.slane %v1722, 1
          %v1724 = vadd.f32 %v1722, %v1723
          %v1725 = vrcp.pop 8.0
          %v1726 = vmul.f32 %v1717, %v1725
          %v1727 = vmul.f32 %v1724, %v1725
          %v1728 = vld [vmem:[%s14] sm:$0xff]
          %v1729 = vld [vmem:[%s14 + $0x8] sm:$0xff]
          %v1730 = vld [vmem:[%s14 + $0x10] sm:$0xff]
          %v1731 = vld [vmem:[%s14 + $0x18] sm:$0xff]
          %v1732 = vld [vmem:[%s15] sm:$0x1]
          %v1734 = vlaneseq
          %v1735 = vshrl.u32 %v1734, 7
          %v1736 = vsub.s32 0, %v1735
          %v1737 = vrot.slane %v1732, %v1736
          %vm1741 = vcmask 1041409
          %v1742 = vsel %vm1741, %v1727, %v1726
          %v1743 = vsel %vm740, %v1742, 0
          %1745 = vmatprep.subr.mxu0 0.0
          %1746 = vmatpush1.msra.mxu0 %v1728
          %1747 = vmatprep.subr.mxu0 0.0
          %1748 = vmatpush1.msra.mxu0 %v1729
          %1749 = vmatprep.subr.mxu0 0.0
          %1750 = vmatpush1.msra.mxu0 %v1730
          %1751 = vmatprep.subr.mxu0 0.0
          %1752 = vmatpush1.msra.mxu0 %v1731
          %1753 = vmatprep.subr.mxu0 0.0
          %1754 = vmatpush1.msra.mxu0 0.0
          %1755 = vmatprep.subr.mxu0 0.0
          %1756 = vmatpush1.msra.mxu0 0.0
          %1757 = vmatprep.subr.mxu0 0.0
          %1758 = vmatpush1.msra.mxu0 0.0
          %1759 = vmatprep.subr.mxu0 0.0
          %1760 = vmatpush1.msra.mxu0 0.0
          %1761 = vmatprep.subr.mxu0 0.0
          %1762 = vmatpush1.msra.mxu0 0.0
          %1763 = vmatprep.subr.mxu0 0.0
          %1764 = vmatpush1.msra.mxu0 0.0
          %1765 = vmatprep.subr.mxu0 0.0
          %1766 = vmatpush1.msra.mxu0 0.0
          %1767 = vmatprep.subr.mxu0 0.0
          %1768 = vmatpush1.msra.mxu0 0.0
          %1769 = vmatprep.subr.mxu0 0.0
          %1770 = vmatpush1.msra.mxu0 0.0
          %1771 = vmatprep.subr.mxu0 0.0
          %1772 = vmatpush1.msra.mxu0 0.0
          %1773 = vmatprep.subr.mxu0 0.0
          %1774 = vmatpush1.msra.mxu0 0.0
          %1775 = vmatprep.subr.mxu0 0.0
          %1776 = vmatpush1.msra.mxu0 0.0
          %1777 = vmatprep.subr.mxu0 0.0
          %1778 = vmatpush1.msra.mxu0 0.0
          %1779 = vmatprep.subr.mxu0 0.0
          %1780 = vmatpush1.msra.mxu0 0.0
          %1781 = vmatprep.subr.mxu0 0.0
          %1782 = vmatpush1.msra.mxu0 0.0
          %1783 = vmatprep.subr.mxu0 0.0
          %1784 = vmatpush1.msra.mxu0 0.0
          %1785 = vmatprep.subr.mxu0 0.0
          %1786 = vmatpush1.msra.mxu0 0.0
          %1787 = vmatprep.subr.mxu0 0.0
          %1788 = vmatpush1.msra.mxu0 0.0
          %1789 = vmatprep.subr.mxu0 0.0
          %1790 = vmatpush1.msra.mxu0 0.0
          %1791 = vmatprep.subr.mxu0 0.0
          %1792 = vmatpush1.msra.mxu0 0.0
          %1793 = vmatprep.subr.mxu0 0.0
          %1794 = vmatpush1.msra.mxu0 0.0
          %1795 = vmatprep.subr.mxu0 0.0
          %1796 = vmatpush1.msra.mxu0 0.0
          %1797 = vmatprep.subr.mxu0 0.0
          %1798 = vmatpush1.msra.mxu0 0.0
          %1799 = vmatprep.subr.mxu0 0.0
          %1800 = vmatpush1.msra.mxu0 0.0
          %1801 = vmatprep.subr.mxu0 0.0
          %1802 = vmatpush1.msra.mxu0 0.0
          %1803 = vmatprep.subr.mxu0 0.0
          %1804 = vmatpush1.msra.mxu0 0.0
          %1805 = vmatprep.subr.mxu0 0.0
          %1806 = vmatpush1.msra.mxu0 0.0
          %1807 = vmatprep.subr.mxu0 0.0
          %1808 = vmatpush1.msra.mxu0 0.0
          %1809 = vmatprep.mubr.f32.mxu0 0.0
          %1810 = vmatmul.mubr.f32.gmra.mrb[0].mxu0 %v1743
          %v1811 = vpop.f32.mrb[0].mxu0
          %v1812 = vadd.f32 %v1737, %v1811
          %v1813 = vpop.f32.mrb[0].mxu0
          %1814 = vdwg.mxu0
          %vm1815 = vcmask 25600
          %1816 = vst.msk [vmem:[#allocation3] sm:$0x3] %vm1815, %v1812
        $region92: #{forward.1} parent=83 // pred_fallthru
          _
        // Predicated region
        $region93: #{forward.1} parent=83 // pred_check
          %p1817 = pneg %p437
        $region94: #{forward.1} parent=83 // pred_check_branch
          %1819 = sbr.rel (%p1817) target = $region96
        $region95: #{forward.1} parent=83 // pred_region
          %s1821 = ssub.s32 32, 32
          %1822 = vsyncadd [#allocation4], %s1821
          %s1824 = sshll.u32 [#allocation3], 4
          %s1825 = int_to_ptr.vmem [resolvable:$true] %s1824
          %1827 = dma.vmem_to_hbm [thread:$0]  %s1825, 32, %s16, [#allocation4]
        $region96: #{forward.1} parent=83 // pred_fallthru
          _
        // Predicated region
        $region97: #{forward.1} parent=83 // pred_check
          %p1828 = pneg %p437
        $region98: #{forward.1} parent=83 // pred_check_branch
          %1830 = sbr.rel (%p1828) target = $region100
        $region99: #{forward.1} parent=83 // pred_region
          %1831 = dma.done [#allocation4], 32
        $region100: #{forward.1} parent=83 // pred_fallthru
          _
      $region84: #{forward.1} parent=5 // pred_fallthru
        _
      %p1832 = scmp.le.s32.totalorder 2, %s23
      // Predicated region
      $region101: #{forward.1} parent=5 // pred_check
        %p1833 = pneg %p1832
      $region102: #{forward.1} parent=5 // pred_check_branch
        %1835 = sbr.rel (%p1833) target = $region104
      $region103: #{forward.1} parent=5 // pred_region
        %s1836 = ssub.s32 %s23, 2
      $region104: #{forward.1} parent=5 // pred_fallthru
        _
    $region6: #{forward.1} parent=1 // loop_footer
      %s27 = sadd.s32 1, %s23
    $region7: #{forward.1} parent=1 // loop_footer_branch
      %22 = sbr.rel target = $region3
    $region8: #{forward.1} parent=1 // loop_exit
      _
    %1837 = vsyncpa [#allocation4], 1
    %s1838 = scalar_lea.sflag [#allocation4], 1
    %1839 = vsyncpa %s1838, 1

</llo_original>
